<compile_context>
chip_gen: v7x
topology: tpu7x:2x2x1
jax: 0.10.0
libtpu: 0.0.40
codegen_flags: <defaults>
</compile_context>

<pallas_src>
import jax
import jax.numpy as jnp
from jax.experimental import pallas as pl
from jax.experimental.pallas import tpu as pltpu

B = 2            # demo batch (wrapper handles any B; larger B amortizes weight DMA)
C_FEAT = 1280    # MobileNetV2 feature channels (fixed by fc: Linear(1280, 512))
H = W = 4        # small spatial extent of the feature map
HID1, HID2, NCLS = 512, 128, 2
TILE_B_MAX = 256  # MXU M-extent on v6e/v7x; 2x128 passes on v5e — fine everywhere
B_ALIGN = 16      # bf16 sublane packing (and (8,128) block divisibility)


def _round_up(x, m):
    return ((x + m - 1) // m) * m


def rust_head_kernel(pooled_ref, w1_ref, b1_ref, w2_ref, b2_ref, w3_ref, b3_ref,
                     o_ref):
    """One grid step = one batch tile. All weights resident, three matmuls fused.

    pooled_ref: [TILE_B, 1280] bf16 (streamed per batch tile)
    w1_ref: [1280, 512] bf16   b1_ref: [1, 512] f32   (resident)
    w2_ref: [512, 128]  bf16   b2_ref: [1, 128] f32   (resident)
    w3_ref: [128, 2]    bf16   b3_ref: [1, 2]   f32   (resident)
    o_ref : [TILE_B, 2] f32    (streamed per batch tile)
    """
    # Layer 1: bf16 x bf16 -> f32 on the MXU; bias + ReLU in f32 on the VPU.
    h1 = jnp.dot(pooled_ref[...], w1_ref[...], preferred_element_type=jnp.float32)
    h1 = jnp.maximum(h1 + b1_ref[...], 0.0)                        # [TILE_B, 512] f32

    # Layer 2.
    h2 = jnp.dot(h1.astype(jnp.bfloat16), w2_ref[...],
                 preferred_element_type=jnp.float32)
    h2 = jnp.maximum(h2 + b2_ref[...], 0.0)                        # [TILE_B, 128] f32

    # Layer 3 (N=2: single, mostly idle MXU pass; acceptable at this size).
    logits = jnp.dot(h2.astype(jnp.bfloat16), w3_ref[...],
                     preferred_element_type=jnp.float32) + b3_ref[...]
    o_ref[...] = logits.astype(o_ref.dtype)                        # [TILE_B, 2]


def rust_classifier_head(x_nchw, w1_bf16, b1, w2_bf16, b2, w3_bf16, b3):
    """x_nchw: [B, 1280, H, W] feature map (PyTorch NCHW). Returns logits [B, 2]."""
    bsz = x_nchw.shape[0]

    # AdaptiveAvgPool2d((1,1)) + flatten == mean over (H, W): one fused XLA reduction
    # on the NCHW layout (no transpose / extra HBM copy). Accumulate in f32, cast the
    # tiny pooled activation to bf16 so both MXU operands of layer 1 are bf16.
    pooled = jnp.mean(x_nchw.astype(jnp.float32), axis=(2, 3)).astype(jnp.bfloat16)

    # Pad batch to a sublane-packed multiple; tile it for large B, single step for small.
    tile_b = min(TILE_B_MAX, _round_up(bsz, B_ALIGN))
    b_pad = _round_up(bsz, tile_b)
    if b_pad != bsz:
        pooled = jnp.pad(pooled, ((0, b_pad - bsz), (0, 0)))
    grid = (b_pad // tile_b,)

    grid_spec = pltpu.PrefetchScalarGridSpec(
        num_scalar_prefetch=0,
        grid=grid,
        in_specs=[
            pl.BlockSpec((tile_b, C_FEAT), lambda i: (i, 0)),      # pooled (streamed)
            pl.BlockSpec((C_FEAT, HID1), lambda i: (0, 0)),        # w1 (resident)
            pl.BlockSpec((1, HID1), lambda i: (0, 0)),             # b1 (resident)
            pl.BlockSpec((HID1, HID2), lambda i: (0, 0)),          # w2 (resident)
            pl.BlockSpec((1, HID2), lambda i: (0, 0)),             # b2 (resident)
            pl.BlockSpec((HID2, NCLS), lambda i: (0, 0)),          # w3 (resident)
            pl.BlockSpec((1, NCLS), lambda i: (0, 0)),             # b3 (resident)
        ],
        out_specs=pl.BlockSpec((tile_b, NCLS), lambda i: (i, 0)),  # logits (streamed)
    )

    mac = C_FEAT * HID1 + HID1 * HID2 + HID2 * NCLS
    cost = pl.CostEstimate(
        flops=2 * b_pad * mac,
        transcendentals=0,
        bytes_accessed=(2 * mac                       # bf16 weights
                        + 4 * (HID1 + HID2 + NCLS)    # f32 biases
                        + 2 * b_pad * C_FEAT          # bf16 pooled in
                        + 4 * b_pad * NCLS))          # f32 logits out

    out = pl.pallas_call(
        rust_head_kernel,
        out_shape=jax.ShapeDtypeStruct((b_pad, NCLS), jnp.float32),
        grid_spec=grid_spec,
        compiler_params=pltpu.CompilerParams(
            dimension_semantics=("parallel",)),       # batch tiles are independent
        cost_estimate=cost,
    )(pooled, w1_bf16, b1, w2_bf16, b2, w3_bf16, b3)

    return out[:bsz]


def _init_linear(key, fan_in, fan_out):
    # PyTorch nn.Linear default init: U(-1/sqrt(fan_in), 1/sqrt(fan_in)).
    kw, kb = jax.random.split(key)
    bound = 1.0 / (fan_in ** 0.5)
    w = jax.random.uniform(kw, (fan_in, fan_out), jnp.float32, -bound, bound)
    b = jax.random.uniform(kb, (1, fan_out), jnp.float32, -bound, bound)
    return w, b


def _reference_f32(x_nchw, w1, b1, w2, b2, w3, b3):
    pooled = jnp.mean(x_nchw, axis=(2, 3))
    h1 = jnp.maximum(pooled @ w1 + b1, 0.0)
    h2 = jnp.maximum(h1 @ w2 + b2, 0.0)
    return h2 @ w3 + b3


def _reference_matched(x_nchw, w1b, b1, w2b, b2, w3b, b3):
    # Same bf16-operand / f32-accumulate recipe as the kernel (apples-to-apples check).
    pooled = jnp.mean(x_nchw.astype(jnp.float32), axis=(2, 3)).astype(jnp.bfloat16)
    h1 = jnp.maximum(
        jnp.dot(pooled, w1b, preferred_element_type=jnp.float32) + b1, 0.0)
    h2 = jnp.maximum(
        jnp.dot(h1.astype(jnp.bfloat16), w2b, preferred_element_type=jnp.float32) + b2, 0.0)
    return jnp.dot(h2.astype(jnp.bfloat16), w3b, preferred_element_type=jnp.float32) + b3


if __name__ == "__main__":
    key = jax.random.PRNGKey(0)
    kx, k1, k2, k3 = jax.random.split(key, 4)

    # "Input" to the translated compute: MobileNetV2 feature map, NCHW.
    x = jax.random.normal(kx, (B, C_FEAT, H, W), jnp.float32)

    w1, b1 = _init_linear(k1, C_FEAT, HID1)
    w2, b2 = _init_linear(k2, HID1, HID2)
    w3, b3 = _init_linear(k3, HID2, NCLS)

    # Store weights in bf16 once (halves the dominant HBM weight DMA); biases stay f32.
    w1b = w1.astype(jnp.bfloat16)
    w2b = w2.astype(jnp.bfloat16)
    w3b = w3.astype(jnp.bfloat16)

    head = jax.jit(rust_classifier_head)
    out = jax.block_until_ready(head(x, w1b, b1, w2b, b2, w3b, b3))

    assert out.shape == (B, NCLS)

    # Strict check against a precision-matched (bf16 operands, f32 accumulate) reference.
    ref_m = _reference_matched(x, w1b, b1, w2b, b2, w3b, b3)
    assert jnp.allclose(out, ref_m, atol=1e-4, rtol=1e-3), "kernel mismatch vs matched ref"

    # Loose check against the pure-f32 reference (bf16 weight quantization tolerance).
    ref_f32 = _reference_f32(x, w1, b1, w2, b2, w3, b3)
    assert jnp.allclose(out, ref_f32, atol=5e-3, rtol=1e-2), "kernel drifted vs f32 ref"

    print("KERNEL_OK")
</pallas_src>

<mosaic_0001>
module attributes {stable_mosaic.version = 11 : i64} {
  func.func @rust_head_kernel(%arg0: i32, %arg1: memref<16x1280xbf16, #tpu.memory_space<vmem>>, %arg2: memref<1280x512xbf16, #tpu.memory_space<vmem>>, %arg3: memref<1x512xf32, #tpu.memory_space<vmem>>, %arg4: memref<512x128xbf16, #tpu.memory_space<vmem>>, %arg5: memref<1x128xf32, #tpu.memory_space<vmem>>, %arg6: memref<128x2xbf16, #tpu.memory_space<vmem>>, %arg7: memref<1x2xf32, #tpu.memory_space<vmem>>, %arg8: memref<16x2xf32, #tpu.memory_space<vmem>>) attributes {dimension_semantics = [#tpu.dimension_semantics<parallel>], iteration_bounds = array<i64: 1>, scalar_prefetch = 0 : i64, scratch_operands = 0 : i64, tpu.core_type = #tpu.core_type<tc>, window_params = [{transform_indices = @transform_0, window_bounds = array<i64: 16, 1280>}, {pipeline_mode = #tpu.pipeline_mode<synchronous>, transform_indices = @transform_1, window_bounds = array<i64: 1280, 512>}, {pipeline_mode = #tpu.pipeline_mode<synchronous>, transform_indices = @transform_2, window_bounds = array<i64: 1, 512>}, {pipeline_mode = #tpu.pipeline_mode<synchronous>, transform_indices = @transform_3, window_bounds = array<i64: 512, 128>}, {pipeline_mode = #tpu.pipeline_mode<synchronous>, transform_indices = @transform_4, window_bounds = array<i64: 1, 128>}, {pipeline_mode = #tpu.pipeline_mode<synchronous>, transform_indices = @transform_5, window_bounds = array<i64: 128, 2>}, {pipeline_mode = #tpu.pipeline_mode<synchronous>, transform_indices = @transform_6, window_bounds = array<i64: 1, 2>}, {transform_indices = @transform_7, window_bounds = array<i64: 16, 2>}]} {
    %c0 = arith.constant 0 : index
    %c0_0 = arith.constant 0 : index
    %0 = vector.load %arg1[%c0, %c0_0] : memref<16x1280xbf16, #tpu.memory_space<vmem>>, vector<16x1280xbf16>
    %c0_1 = arith.constant 0 : index
    %c0_2 = arith.constant 0 : index
    %1 = vector.load %arg2[%c0_1, %c0_2] : memref<1280x512xbf16, #tpu.memory_space<vmem>>, vector<1280x512xbf16>
    %cst = arith.constant dense<0.000000e+00> : vector<16x512xf32>
    %2 = tpu.matmul %0, %1, %cst {dimension_numbers = #tpu.dot_dimension_numbers<[1], [0], [0], [1], [0, 0, 1, 1], [], []>} : vector<16x1280xbf16>, vector<1280x512xbf16>, vector<16x512xf32> -> vector<16x512xf32>
    %c0_3 = arith.constant 0 : index
    %c0_4 = arith.constant 0 : index
    %3 = vector.load %arg3[%c0_3, %c0_4] : memref<1x512xf32, #tpu.memory_space<vmem>>, vector<1x512xf32>
    %4 = vector.broadcast %3 : vector<1x512xf32> to vector<16x512xf32>
    %5 = arith.addf %2, %4 : vector<16x512xf32>
    %cst_5 = arith.constant 0.000000e+00 : f32
    %6 = vector.broadcast %cst_5 : f32 to vector<16x512xf32>
    %7 = arith.maximumf %5, %6 : vector<16x512xf32>
    %8 = arith.truncf %7 : vector<16x512xf32> to vector<16x512xbf16>
    %c0_6 = arith.constant 0 : index
    %c0_7 = arith.constant 0 : index
    %9 = vector.load %arg4[%c0_6, %c0_7] : memref<512x128xbf16, #tpu.memory_space<vmem>>, vector<512x128xbf16>
    %cst_8 = arith.constant dense<0.000000e+00> : vector<16x128xf32>
    %10 = tpu.matmul %8, %9, %cst_8 {dimension_numbers = #tpu.dot_dimension_numbers<[1], [0], [0], [1], [0, 0, 1, 1], [], []>} : vector<16x512xbf16>, vector<512x128xbf16>, vector<16x128xf32> -> vector<16x128xf32>
    %c0_9 = arith.constant 0 : index
    %c0_10 = arith.constant 0 : index
    %11 = vector.load %arg5[%c0_9, %c0_10] : memref<1x128xf32, #tpu.memory_space<vmem>>, vector<1x128xf32>
    %12 = vector.broadcast %11 : vector<1x128xf32> to vector<16x128xf32>
    %13 = arith.addf %10, %12 : vector<16x128xf32>
    %cst_11 = arith.constant 0.000000e+00 : f32
    %14 = vector.broadcast %cst_11 : f32 to vector<16x128xf32>
    %15 = arith.maximumf %13, %14 : vector<16x128xf32>
    %16 = arith.truncf %15 : vector<16x128xf32> to vector<16x128xbf16>
    %c0_12 = arith.constant 0 : index
    %c0_13 = arith.constant 0 : index
    %17 = vector.load %arg6[%c0_12, %c0_13] : memref<128x2xbf16, #tpu.memory_space<vmem>>, vector<128x2xbf16>
    %cst_14 = arith.constant dense<0.000000e+00> : vector<16x2xf32>
    %18 = tpu.matmul %16, %17, %cst_14 {dimension_numbers = #tpu.dot_dimension_numbers<[1], [0], [0], [1], [0, 0, 1, 1], [], []>} : vector<16x128xbf16>, vector<128x2xbf16>, vector<16x2xf32> -> vector<16x2xf32>
    %c0_15 = arith.constant 0 : index
    %c0_16 = arith.constant 0 : index
    %19 = vector.load %arg7[%c0_15, %c0_16] : memref<1x2xf32, #tpu.memory_space<vmem>>, vector<1x2xf32>
    %20 = vector.broadcast %19 : vector<1x2xf32> to vector<16x2xf32>
    %21 = arith.addf %18, %20 : vector<16x2xf32>
    %c0_17 = arith.constant 0 : index
    %c0_18 = arith.constant 0 : index
    %22 = vector.load %arg8[%c0_17, %c0_18] : memref<16x2xf32, #tpu.memory_space<vmem>>, vector<16x2xf32>
    tpu.vector_store %arg8[%c0_17, %c0_18], %21 {strides = array<i32>} : memref<16x2xf32, #tpu.memory_space<vmem>>, vector<16x2xf32>,
    return
  }
  func.func @transform_0(%arg0: i32) -> (i32, i32) {
    %c0_i32 = arith.constant 0 : i32
    %c0_i32_0 = arith.constant 0 : i32
    return %arg0, %c0_i32 : i32, i32
  }
  func.func @transform_1(%arg0: i32) -> (i32, i32) {
    %c0_i32 = arith.constant 0 : i32
    %c0_i32_0 = arith.constant 0 : i32
    %c0_i32_1 = arith.constant 0 : i32
    return %c0_i32, %c0_i32_0 : i32, i32
  }
  func.func @transform_2(%arg0: i32) -> (i32, i32) {
    %c0_i32 = arith.constant 0 : i32
    %c0_i32_0 = arith.constant 0 : i32
    %c0_i32_1 = arith.constant 0 : i32
    return %c0_i32, %c0_i32_0 : i32, i32
  }
  func.func @transform_3(%arg0: i32) -> (i32, i32) {
    %c0_i32 = arith.constant 0 : i32
    %c0_i32_0 = arith.constant 0 : i32
    %c0_i32_1 = arith.constant 0 : i32
    return %c0_i32, %c0_i32_0 : i32, i32
  }
  func.func @transform_4(%arg0: i32) -> (i32, i32) {
    %c0_i32 = arith.constant 0 : i32
    %c0_i32_0 = arith.constant 0 : i32
    %c0_i32_1 = arith.constant 0 : i32
    return %c0_i32, %c0_i32_0 : i32, i32
  }
  func.func @transform_5(%arg0: i32) -> (i32, i32) {
    %c0_i32 = arith.constant 0 : i32
    %c0_i32_0 = arith.constant 0 : i32
    %c0_i32_1 = arith.constant 0 : i32
    return %c0_i32, %c0_i32_0 : i32, i32
  }
  func.func @transform_6(%arg0: i32) -> (i32, i32) {
    %c0_i32 = arith.constant 0 : i32
    %c0_i32_0 = arith.constant 0 : i32
    %c0_i32_1 = arith.constant 0 : i32
    return %c0_i32, %c0_i32_0 : i32, i32
  }
  func.func @transform_7(%arg0: i32) -> (i32, i32) {
    %c0_i32 = arith.constant 0 : i32
    %c0_i32_0 = arith.constant 0 : i32
    return %arg0, %c0_i32 : i32, i32
  }
}

</mosaic_0001>

<llo_original>
// kernel: rust_classifier_head.1
$region0: #{rust_classifier_head.1}
  #allocation0 [shape = 'u32[]', space=smem, size = 0x4, offset = 0x4, fixed_abs, tag = 'smem constant byte address 0x4 - core index']
  #allocation1 [shape = 'u32[144,128]{1,0:T(1,128)}', space=vmem, size = 0x12000, scoped, tag = 'internal scratch']
  %s0 = inlined_call_operand.vmem [shape: bf16[16,1280], index: 0, kind: input, shape index: {}]
  %s1 = inlined_call_operand.hbm [shape: bf16[1280,512], index: 1, kind: input, shape index: {}]
  %s2 = inlined_call_operand.hbm [shape: f32[1,512], index: 2, kind: input, shape index: {}]
  %s3 = inlined_call_operand.hbm [shape: bf16[512,128], index: 3, kind: input, shape index: {}]
  %s4 = inlined_call_operand.hbm [shape: f32[1,128], index: 4, kind: input, shape index: {}]
  %s5 = inlined_call_operand.vmem [shape: bf16[128,2], index: 5, kind: input, shape index: {}]
  %s6 = inlined_call_operand.hbm [shape: f32[1,2], index: 6, kind: input, shape index: {}]
  %s7 = inlined_call_operand.vmem [shape: f32[16,2], index: 7, kind: output, shape index: {}]
  %s8 = sld [smem:[#allocation0]]
  $region58: #{rust_classifier_head.1} parent=0
    _
  %s10 = ssub.s32 1, %s8
  %s11 = scalar_select 0, %s10, %s8
  $region1: #{rust_classifier_head.1} parent=0
    #allocation2 [shape = 'u8[1310720]{0}', space=vmem, size = 0x140000, scoped, tag = 'input window, operand 1, single buffered']
    #allocation3 [shape = 's32[1]{0}', space=sflag, size = 0x4, scoped, tag = 'scoped memory for rust_classifier_head.1']
    #allocation4 [shape = 'u8[2048]{0}', space=vmem, size = 0x800, scoped, tag = 'input window, operand 2, single buffered']
    #allocation5 [shape = 's32[1]{0}', space=sflag, size = 0x4, scoped, tag = 'scoped memory for rust_classifier_head.1']
    #allocation6 [shape = 'u8[131072]{0}', space=vmem, size = 0x20000, scoped, tag = 'input window, operand 3, single buffered']
    #allocation7 [shape = 'u8[512]{0}', space=vmem, size = 0x400, scoped, tag = 'input window, operand 4, single buffered']
    #allocation8 [shape = 's32[1]{0}', space=sflag, size = 0x4, scoped, tag = 'scoped memory for rust_classifier_head.1']
    #allocation9 [shape = 'u8[512]{0}', space=vmem, size = 0x400, scoped, tag = 'input window, operand 6, single buffered']
    %12 = vsyncpa [#allocation3], 0
    %13 = vsyncpa [#allocation5], 0
    %14 = vsyncpa [#allocation8], 0
    // Predicated region
    $region2: #{rust_classifier_head.1} parent=1 // pred_check
      _
    $region3: #{rust_classifier_head.1} parent=1 // pred_check_branch
      %16 = sbr.rel (0) target = $region5
    $region4: #{rust_classifier_head.1} parent=1 // pred_region
      _
    $region5: #{rust_classifier_head.1} parent=1 // pred_fallthru
      _
    // Predicated region
    $region6: #{rust_classifier_head.1} parent=1 // pred_check
      _
    $region7: #{rust_classifier_head.1} parent=1 // pred_check_branch
      %18 = sbr.rel (0) target = $region9
    $region8: #{rust_classifier_head.1} parent=1 // pred_region
      %s20 = ssub.s32 40960, 40960
      %21 = vsyncadd [#allocation3], %s20
      %s22 = sshll.u32 [#allocation2], 4
      %s23 = int_to_ptr.vmem [resolvable:$true] %s22
      %28 = dma.hbm_to_vmem [thread:$0]  %s1, 40960, %s23, [#allocation3], 256, 256, 16
    $region9: #{rust_classifier_head.1} parent=1 // pred_fallthru
      _
    // Predicated region
    $region10: #{rust_classifier_head.1} parent=1 // pred_check
      _
    $region11: #{rust_classifier_head.1} parent=1 // pred_check_branch
      %30 = sbr.rel (0) target = $region13
    $region12: #{rust_classifier_head.1} parent=1 // pred_region
      %s32 = ssub.s32 64, 64
      %33 = vsyncadd [#allocation5], %s32
      %s35 = sshll.u32 [#allocation4], 4
      %s36 = int_to_ptr.vmem [resolvable:$true] %s35
      %38 = dma.hbm_to_vmem [thread:$0]  %s2, 64, %s36, [#allocation5]
    $region13: #{rust_classifier_head.1} parent=1 // pred_fallthru
      _
    // Predicated region
    $region14: #{rust_classifier_head.1} parent=1 // pred_check
      _
    $region15: #{rust_classifier_head.1} parent=1 // pred_check_branch
      %40 = sbr.rel (0) target = $region17
    $region16: #{rust_classifier_head.1} parent=1 // pred_region
      %s42 = ssub.s32 4096, 4096
      %43 = vsyncadd [#allocation5], %s42
      %s44 = sshll.u32 [#allocation6], 4
      %s45 = int_to_ptr.vmem [resolvable:$true] %s44
      %50 = dma.hbm_to_vmem [thread:$0]  %s3, 4096, %s45, [#allocation5], 64, 64, 4
    $region17: #{rust_classifier_head.1} parent=1 // pred_fallthru
      _
    // Predicated region
    $region18: #{rust_classifier_head.1} parent=1 // pred_check
      _
    $region19: #{rust_classifier_head.1} parent=1 // pred_check_branch
      %52 = sbr.rel (0) target = $region21
    $region20: #{rust_classifier_head.1} parent=1 // pred_region
      %s54 = ssub.s32 16, 16
      %55 = vsyncadd [#allocation8], %s54
      %s57 = sshll.u32 [#allocation7], 4
      %s58 = int_to_ptr.vmem [resolvable:$true] %s57
      %60 = dma.hbm_to_vmem [thread:$0]  %s4, 16, %s58, [#allocation8]
    $region21: #{rust_classifier_head.1} parent=1 // pred_fallthru
      _
    // Predicated region
    $region22: #{rust_classifier_head.1} parent=1 // pred_check
      _
    $region23: #{rust_classifier_head.1} parent=1 // pred_check_branch
      %62 = sbr.rel (0) target = $region25
    $region24: #{rust_classifier_head.1} parent=1 // pred_region
      _
    $region25: #{rust_classifier_head.1} parent=1 // pred_fallthru
      _
    // Predicated region
    $region26: #{rust_classifier_head.1} parent=1 // pred_check
      _
    $region27: #{rust_classifier_head.1} parent=1 // pred_check_branch
      %64 = sbr.rel (0) target = $region29
    $region28: #{rust_classifier_head.1} parent=1 // pred_region
      %s66 = ssub.s32 16, 16
      %67 = vsyncadd [#allocation8], %s66
      %s69 = sshll.u32 [#allocation9], 4
      %s70 = int_to_ptr.vmem [resolvable:$true] %s69
      %72 = dma.hbm_to_vmem [thread:$0]  %s6, 16, %s70, [#allocation8]
    $region29: #{rust_classifier_head.1} parent=1 // pred_fallthru
      _
    // Predicated region
    $region30: #{rust_classifier_head.1} parent=1 // pred_check
      _
    $region31: #{rust_classifier_head.1} parent=1 // pred_check_branch
      %74 = sbr.rel (0) target = $region33
    $region32: #{rust_classifier_head.1} parent=1 // pred_region
      %75 = dma.done [#allocation3], 40960
    $region33: #{rust_classifier_head.1} parent=1 // pred_fallthru
      _
    // Predicated region
    $region34: #{rust_classifier_head.1} parent=1 // pred_check
      _
    $region35: #{rust_classifier_head.1} parent=1 // pred_check_branch
      %77 = sbr.rel (0) target = $region37
    $region36: #{rust_classifier_head.1} parent=1 // pred_region
      %78 = dma.done [#allocation5], 64
    $region37: #{rust_classifier_head.1} parent=1 // pred_fallthru
      _
    // Predicated region
    $region38: #{rust_classifier_head.1} parent=1 // pred_check
      _
    $region39: #{rust_classifier_head.1} parent=1 // pred_check_branch
      %80 = sbr.rel (0) target = $region41
    $region40: #{rust_classifier_head.1} parent=1 // pred_region
      %81 = dma.done [#allocation5], 4096
    $region41: #{rust_classifier_head.1} parent=1 // pred_fallthru
      _
    // Predicated region
    $region42: #{rust_classifier_head.1} parent=1 // pred_check
      _
    $region43: #{rust_classifier_head.1} parent=1 // pred_check_branch
      %83 = sbr.rel (0) target = $region45
    $region44: #{rust_classifier_head.1} parent=1 // pred_region
      %84 = dma.done [#allocation8], 16
    $region45: #{rust_classifier_head.1} parent=1 // pred_fallthru
      _
    // Predicated region
    $region46: #{rust_classifier_head.1} parent=1 // pred_check
      _
    $region47: #{rust_classifier_head.1} parent=1 // pred_check_branch
      %86 = sbr.rel (0) target = $region49
    $region48: #{rust_classifier_head.1} parent=1 // pred_region
      %87 = dma.done [#allocation8], 16
    $region49: #{rust_classifier_head.1} parent=1 // pred_fallthru
      _
    %v89 = vld [vmem:[%s0] sm:$0xff]
    %v90 = vld [vmem:[%s0 + $0x8] sm:$0xff]
    %v91 = vld [vmem:[%s0 + $0x10] sm:$0xff]
    %v92 = vld [vmem:[%s0 + $0x18] sm:$0xff]
    %v93 = vld [vmem:[%s0 + $0x20] sm:$0xff]
    %v94 = vld [vmem:[%s0 + $0x28] sm:$0xff]
    %v95 = vld [vmem:[%s0 + $0x30] sm:$0xff]
    %v96 = vld [vmem:[%s0 + $0x38] sm:$0xff]
    %v97 = vld [vmem:[%s0 + $0x40] sm:$0xff]
    %v98 = vld [vmem:[%s0 + $0x48] sm:$0xff]
    %v99 = vld [vmem:[#allocation2] sm:$0xff]
    %v100 = vld [vmem:[#allocation2 + $0x8] sm:$0xff]
    %v101 = vld [vmem:[#allocation2 + $0x10] sm:$0xff]
    %v102 = vld [vmem:[#allocation2 + $0x18] sm:$0xff]
    %v103 = vld [vmem:[#allocation2 + $0x20] sm:$0xff]
    %v104 = vld [vmem:[#allocation2 + $0x28] sm:$0xff]
    %v105 = vld [vmem:[#allocation2 + $0x30] sm:$0xff]
    %v106 = vld [vmem:[#allocation2 + $0x38] sm:$0xff]
    %v107 = vld [vmem:[#allocation2 + $0x40] sm:$0xff]
    %v108 = vld [vmem:[#allocation2 + $0x48] sm:$0xff]
    %v109 = vld [vmem:[#allocation2 + $0x50] sm:$0xff]
    %v110 = vld [vmem:[#allocation2 + $0x58] sm:$0xff]
    %v111 = vld [vmem:[#allocation2 + $0x60] sm:$0xff]
    %v112 = vld [vmem:[#allocation2 + $0x68] sm:$0xff]
    %v113 = vld [vmem:[#allocation2 + $0x70] sm:$0xff]
    %v114 = vld [vmem:[#allocation2 + $0x78] sm:$0xff]
    %v115 = vld [vmem:[#allocation2 + $0x80] sm:$0xff]
    %v116 = vld [vmem:[#allocation2 + $0x88] sm:$0xff]
    %v117 = vld [vmem:[#allocation2 + $0x90] sm:$0xff]
    %v118 = vld [vmem:[#allocation2 + $0x98] sm:$0xff]
    %v119 = vld [vmem:[#allocation2 + $0xa0] sm:$0xff]
    %v120 = vld [vmem:[#allocation2 + $0xa8] sm:$0xff]
    %v121 = vld [vmem:[#allocation2 + $0xb0] sm:$0xff]
    %v122 = vld [vmem:[#allocation2 + $0xb8] sm:$0xff]
    %v123 = vld [vmem:[#allocation2 + $0xc0] sm:$0xff]
    %v124 = vld [vmem:[#allocation2 + $0xc8] sm:$0xff]
    %v125 = vld [vmem:[#allocation2 + $0xd0] sm:$0xff]
    %v126 = vld [vmem:[#allocation2 + $0xd8] sm:$0xff]
    %v127 = vld [vmem:[#allocation2 + $0xe0] sm:$0xff]
    %v128 = vld [vmem:[#allocation2 + $0xe8] sm:$0xff]
    %v129 = vld [vmem:[#allocation2 + $0xf0] sm:$0xff]
    %v130 = vld [vmem:[#allocation2 + $0xf8] sm:$0xff]
    %v131 = vld [vmem:[#allocation2 + $0x100] sm:$0xff]
    %v132 = vld [vmem:[#allocation2 + $0x108] sm:$0xff]
    %v133 = vld [vmem:[#allocation2 + $0x110] sm:$0xff]
    %v134 = vld [vmem:[#allocation2 + $0x118] sm:$0xff]
    %v135 = vld [vmem:[#allocation2 + $0x120] sm:$0xff]
    %v136 = vld [vmem:[#allocation2 + $0x128] sm:$0xff]
    %v137 = vld [vmem:[#allocation2 + $0x130] sm:$0xff]
    %v138 = vld [vmem:[#allocation2 + $0x138] sm:$0xff]
    %v139 = vld [vmem:[#allocation2 + $0x140] sm:$0xff]
    %v140 = vld [vmem:[#allocation2 + $0x148] sm:$0xff]
    %v141 = vld [vmem:[#allocation2 + $0x150] sm:$0xff]
    %v142 = vld [vmem:[#allocation2 + $0x158] sm:$0xff]
    %v143 = vld [vmem:[#allocation2 + $0x160] sm:$0xff]
    %v144 = vld [vmem:[#allocation2 + $0x168] sm:$0xff]
    %v145 = vld [vmem:[#allocation2 + $0x170] sm:$0xff]
    %v146 = vld [vmem:[#allocation2 + $0x178] sm:$0xff]
    %v147 = vld [vmem:[#allocation2 + $0x180] sm:$0xff]
    %v148 = vld [vmem:[#allocation2 + $0x188] sm:$0xff]
    %v149 = vld [vmem:[#allocation2 + $0x190] sm:$0xff]
    %v150 = vld [vmem:[#allocation2 + $0x198] sm:$0xff]
    %v151 = vld [vmem:[#allocation2 + $0x1a0] sm:$0xff]
    %v152 = vld [vmem:[#allocation2 + $0x1a8] sm:$0xff]
    %v153 = vld [vmem:[#allocation2 + $0x1b0] sm:$0xff]
    %v154 = vld [vmem:[#allocation2 + $0x1b8] sm:$0xff]
    %v155 = vld [vmem:[#allocation2 + $0x1c0] sm:$0xff]
    %v156 = vld [vmem:[#allocation2 + $0x1c8] sm:$0xff]
    %v157 = vld [vmem:[#allocation2 + $0x1d0] sm:$0xff]
    %v158 = vld [vmem:[#allocation2 + $0x1d8] sm:$0xff]
    %v159 = vld [vmem:[#allocation2 + $0x1e0] sm:$0xff]
    %v160 = vld [vmem:[#allocation2 + $0x1e8] sm:$0xff]
    %v161 = vld [vmem:[#allocation2 + $0x1f0] sm:$0xff]
    %v162 = vld [vmem:[#allocation2 + $0x1f8] sm:$0xff]
    %v163 = vld [vmem:[#allocation2 + $0x200] sm:$0xff]
    %v164 = vld [vmem:[#allocation2 + $0x208] sm:$0xff]
    %v165 = vld [vmem:[#allocation2 + $0x210] sm:$0xff]
    %v166 = vld [vmem:[#allocation2 + $0x218] sm:$0xff]
    %v167 = vld [vmem:[#allocation2 + $0x220] sm:$0xff]
    %v168 = vld [vmem:[#allocation2 + $0x228] sm:$0xff]
    %v169 = vld [vmem:[#allocation2 + $0x230] sm:$0xff]
    %v170 = vld [vmem:[#allocation2 + $0x238] sm:$0xff]
    %v171 = vld [vmem:[#allocation2 + $0x240] sm:$0xff]
    %v172 = vld [vmem:[#allocation2 + $0x248] sm:$0xff]
    %v173 = vld [vmem:[#allocation2 + $0x250] sm:$0xff]
    %v174 = vld [vmem:[#allocation2 + $0x258] sm:$0xff]
    %v175 = vld [vmem:[#allocation2 + $0x260] sm:$0xff]
    %v176 = vld [vmem:[#allocation2 + $0x268] sm:$0xff]
    %v177 = vld [vmem:[#allocation2 + $0x270] sm:$0xff]
    %v178 = vld [vmem:[#allocation2 + $0x278] sm:$0xff]
    %v179 = vld [vmem:[#allocation2 + $0x280] sm:$0xff]
    %v180 = vld [vmem:[#allocation2 + $0x288] sm:$0xff]
    %v181 = vld [vmem:[#allocation2 + $0x290] sm:$0xff]
    %v182 = vld [vmem:[#allocation2 + $0x298] sm:$0xff]
    %v183 = vld [vmem:[#allocation2 + $0x2a0] sm:$0xff]
    %v184 = vld [vmem:[#allocation2 + $0x2a8] sm:$0xff]
    %v185 = vld [vmem:[#allocation2 + $0x2b0] sm:$0xff]
    %v186 = vld [vmem:[#allocation2 + $0x2b8] sm:$0xff]
    %v187 = vld [vmem:[#allocation2 + $0x2c0] sm:$0xff]
    %v188 = vld [vmem:[#allocation2 + $0x2c8] sm:$0xff]
    %v189 = vld [vmem:[#allocation2 + $0x2d0] sm:$0xff]
    %v190 = vld [vmem:[#allocation2 + $0x2d8] sm:$0xff]
    %v191 = vld [vmem:[#allocation2 + $0x2e0] sm:$0xff]
    %v192 = vld [vmem:[#allocation2 + $0x2e8] sm:$0xff]
    %v193 = vld [vmem:[#allocation2 + $0x2f0] sm:$0xff]
    %v194 = vld [vmem:[#allocation2 + $0x2f8] sm:$0xff]
    %v195 = vld [vmem:[#allocation2 + $0x300] sm:$0xff]
    %v196 = vld [vmem:[#allocation2 + $0x308] sm:$0xff]
    %v197 = vld [vmem:[#allocation2 + $0x310] sm:$0xff]
    %v198 = vld [vmem:[#allocation2 + $0x318] sm:$0xff]
    %v199 = vld [vmem:[#allocation2 + $0x320] sm:$0xff]
    %v200 = vld [vmem:[#allocation2 + $0x328] sm:$0xff]
    %v201 = vld [vmem:[#allocation2 + $0x330] sm:$0xff]
    %v202 = vld [vmem:[#allocation2 + $0x338] sm:$0xff]
    %v203 = vld [vmem:[#allocation2 + $0x340] sm:$0xff]
    %v204 = vld [vmem:[#allocation2 + $0x348] sm:$0xff]
    %v205 = vld [vmem:[#allocation2 + $0x350] sm:$0xff]
    %v206 = vld [vmem:[#allocation2 + $0x358] sm:$0xff]
    %v207 = vld [vmem:[#allocation2 + $0x360] sm:$0xff]
    %v208 = vld [vmem:[#allocation2 + $0x368] sm:$0xff]
    %v209 = vld [vmem:[#allocation2 + $0x370] sm:$0xff]
    %v210 = vld [vmem:[#allocation2 + $0x378] sm:$0xff]
    %v211 = vld [vmem:[#allocation2 + $0x380] sm:$0xff]
    %v212 = vld [vmem:[#allocation2 + $0x388] sm:$0xff]
    %v213 = vld [vmem:[#allocation2 + $0x390] sm:$0xff]
    %v214 = vld [vmem:[#allocation2 + $0x398] sm:$0xff]
    %v215 = vld [vmem:[#allocation2 + $0x3a0] sm:$0xff]
    %v216 = vld [vmem:[#allocation2 + $0x3a8] sm:$0xff]
    %v217 = vld [vmem:[#allocation2 + $0x3b0] sm:$0xff]
    %v218 = vld [vmem:[#allocation2 + $0x3b8] sm:$0xff]
    %v219 = vld [vmem:[#allocation2 + $0x3c0] sm:$0xff]
    %v220 = vld [vmem:[#allocation2 + $0x3c8] sm:$0xff]
    %v221 = vld [vmem:[#allocation2 + $0x3d0] sm:$0xff]
    %v222 = vld [vmem:[#allocation2 + $0x3d8] sm:$0xff]
    %v223 = vld [vmem:[#allocation2 + $0x3e0] sm:$0xff]
    %v224 = vld [vmem:[#allocation2 + $0x3e8] sm:$0xff]
    %v225 = vld [vmem:[#allocation2 + $0x3f0] sm:$0xff]
    %v226 = vld [vmem:[#allocation2 + $0x3f8] sm:$0xff]
    %v227 = vld [vmem:[#allocation2 + $0x400] sm:$0xff]
    %v228 = vld [vmem:[#allocation2 + $0x408] sm:$0xff]
    %v229 = vld [vmem:[#allocation2 + $0x410] sm:$0xff]
    %v230 = vld [vmem:[#allocation2 + $0x418] sm:$0xff]
    %v231 = vld [vmem:[#allocation2 + $0x420] sm:$0xff]
    %v232 = vld [vmem:[#allocation2 + $0x428] sm:$0xff]
    %v233 = vld [vmem:[#allocation2 + $0x430] sm:$0xff]
    %v234 = vld [vmem:[#allocation2 + $0x438] sm:$0xff]
    %v235 = vld [vmem:[#allocation2 + $0x440] sm:$0xff]
    %v236 = vld [vmem:[#allocation2 + $0x448] sm:$0xff]
    %v237 = vld [vmem:[#allocation2 + $0x450] sm:$0xff]
    %v238 = vld [vmem:[#allocation2 + $0x458] sm:$0xff]
    %v239 = vld [vmem:[#allocation2 + $0x460] sm:$0xff]
    %v240 = vld [vmem:[#allocation2 + $0x468] sm:$0xff]
    %v241 = vld [vmem:[#allocation2 + $0x470] sm:$0xff]
    %v242 = vld [vmem:[#allocation2 + $0x478] sm:$0xff]
    %v243 = vld [vmem:[#allocation2 + $0x480] sm:$0xff]
    %v244 = vld [vmem:[#allocation2 + $0x488] sm:$0xff]
    %v245 = vld [vmem:[#allocation2 + $0x490] sm:$0xff]
    %v246 = vld [vmem:[#allocation2 + $0x498] sm:$0xff]
    %v247 = vld [vmem:[#allocation2 + $0x4a0] sm:$0xff]
    %v248 = vld [vmem:[#allocation2 + $0x4a8] sm:$0xff]
    %v249 = vld [vmem:[#allocation2 + $0x4b0] sm:$0xff]
    %v250 = vld [vmem:[#allocation2 + $0x4b8] sm:$0xff]
    %v251 = vld [vmem:[#allocation2 + $0x4c0] sm:$0xff]
    %v252 = vld [vmem:[#allocation2 + $0x4c8] sm:$0xff]
    %v253 = vld [vmem:[#allocation2 + $0x4d0] sm:$0xff]
    %v254 = vld [vmem:[#allocation2 + $0x4d8] sm:$0xff]
    %v255 = vld [vmem:[#allocation2 + $0x4e0] sm:$0xff]
    %v256 = vld [vmem:[#allocation2 + $0x4e8] sm:$0xff]
    %v257 = vld [vmem:[#allocation2 + $0x4f0] sm:$0xff]
    %v258 = vld [vmem:[#allocation2 + $0x4f8] sm:$0xff]
    %v259 = vld [vmem:[#allocation2 + $0x500] sm:$0xff]
    %v260 = vld [vmem:[#allocation2 + $0x508] sm:$0xff]
    %v261 = vld [vmem:[#allocation2 + $0x510] sm:$0xff]
    %v262 = vld [vmem:[#allocation2 + $0x518] sm:$0xff]
    %v263 = vld [vmem:[#allocation2 + $0x520] sm:$0xff]
    %v264 = vld [vmem:[#allocation2 + $0x528] sm:$0xff]
    %v265 = vld [vmem:[#allocation2 + $0x530] sm:$0xff]
    %v266 = vld [vmem:[#allocation2 + $0x538] sm:$0xff]
    %v267 = vld [vmem:[#allocation2 + $0x540] sm:$0xff]
    %v268 = vld [vmem:[#allocation2 + $0x548] sm:$0xff]
    %v269 = vld [vmem:[#allocation2 + $0x550] sm:$0xff]
    %v270 = vld [vmem:[#allocation2 + $0x558] sm:$0xff]
    %v271 = vld [vmem:[#allocation2 + $0x560] sm:$0xff]
    %v272 = vld [vmem:[#allocation2 + $0x568] sm:$0xff]
    %v273 = vld [vmem:[#allocation2 + $0x570] sm:$0xff]
    %v274 = vld [vmem:[#allocation2 + $0x578] sm:$0xff]
    %v275 = vld [vmem:[#allocation2 + $0x580] sm:$0xff]
    %v276 = vld [vmem:[#allocation2 + $0x588] sm:$0xff]
    %v277 = vld [vmem:[#allocation2 + $0x590] sm:$0xff]
    %v278 = vld [vmem:[#allocation2 + $0x598] sm:$0xff]
    %v279 = vld [vmem:[#allocation2 + $0x5a0] sm:$0xff]
    %v280 = vld [vmem:[#allocation2 + $0x5a8] sm:$0xff]
    %v281 = vld [vmem:[#allocation2 + $0x5b0] sm:$0xff]
    %v282 = vld [vmem:[#allocation2 + $0x5b8] sm:$0xff]
    %v283 = vld [vmem:[#allocation2 + $0x5c0] sm:$0xff]
    %v284 = vld [vmem:[#allocation2 + $0x5c8] sm:$0xff]
    %v285 = vld [vmem:[#allocation2 + $0x5d0] sm:$0xff]
    %v286 = vld [vmem:[#allocation2 + $0x5d8] sm:$0xff]
    %v287 = vld [vmem:[#allocation2 + $0x5e0] sm:$0xff]
    %v288 = vld [vmem:[#allocation2 + $0x5e8] sm:$0xff]
    %v289 = vld [vmem:[#allocation2 + $0x5f0] sm:$0xff]
    %v290 = vld [vmem:[#allocation2 + $0x5f8] sm:$0xff]
    %v291 = vld [vmem:[#allocation2 + $0x600] sm:$0xff]
    %v292 = vld [vmem:[#allocation2 + $0x608] sm:$0xff]
    %v293 = vld [vmem:[#allocation2 + $0x610] sm:$0xff]
    %v294 = vld [vmem:[#allocation2 + $0x618] sm:$0xff]
    %v295 = vld [vmem:[#allocation2 + $0x620] sm:$0xff]
    %v296 = vld [vmem:[#allocation2 + $0x628] sm:$0xff]
    %v297 = vld [vmem:[#allocation2 + $0x630] sm:$0xff]
    %v298 = vld [vmem:[#allocation2 + $0x638] sm:$0xff]
    %v299 = vld [vmem:[#allocation2 + $0x640] sm:$0xff]
    %v300 = vld [vmem:[#allocation2 + $0x648] sm:$0xff]
    %v301 = vld [vmem:[#allocation2 + $0x650] sm:$0xff]
    %v302 = vld [vmem:[#allocation2 + $0x658] sm:$0xff]
    %v303 = vld [vmem:[#allocation2 + $0x660] sm:$0xff]
    %v304 = vld [vmem:[#allocation2 + $0x668] sm:$0xff]
    %v305 = vld [vmem:[#allocation2 + $0x670] sm:$0xff]
    %v306 = vld [vmem:[#allocation2 + $0x678] sm:$0xff]
    %v307 = vld [vmem:[#allocation2 + $0x680] sm:$0xff]
    %v308 = vld [vmem:[#allocation2 + $0x688] sm:$0xff]
    %v309 = vld [vmem:[#allocation2 + $0x690] sm:$0xff]
    %v310 = vld [vmem:[#allocation2 + $0x698] sm:$0xff]
    %v311 = vld [vmem:[#allocation2 + $0x6a0] sm:$0xff]
    %v312 = vld [vmem:[#allocation2 + $0x6a8] sm:$0xff]
    %v313 = vld [vmem:[#allocation2 + $0x6b0] sm:$0xff]
    %v314 = vld [vmem:[#allocation2 + $0x6b8] sm:$0xff]
    %v315 = vld [vmem:[#allocation2 + $0x6c0] sm:$0xff]
    %v316 = vld [vmem:[#allocation2 + $0x6c8] sm:$0xff]
    %v317 = vld [vmem:[#allocation2 + $0x6d0] sm:$0xff]
    %v318 = vld [vmem:[#allocation2 + $0x6d8] sm:$0xff]
    %v319 = vld [vmem:[#allocation2 + $0x6e0] sm:$0xff]
    %v320 = vld [vmem:[#allocation2 + $0x6e8] sm:$0xff]
    %v321 = vld [vmem:[#allocation2 + $0x6f0] sm:$0xff]
    %v322 = vld [vmem:[#allocation2 + $0x6f8] sm:$0xff]
    %v323 = vld [vmem:[#allocation2 + $0x700] sm:$0xff]
    %v324 = vld [vmem:[#allocation2 + $0x708] sm:$0xff]
    %v325 = vld [vmem:[#allocation2 + $0x710] sm:$0xff]
    %v326 = vld [vmem:[#allocation2 + $0x718] sm:$0xff]
    %v327 = vld [vmem:[#allocation2 + $0x720] sm:$0xff]
    %v328 = vld [vmem:[#allocation2 + $0x728] sm:$0xff]
    %v329 = vld [vmem:[#allocation2 + $0x730] sm:$0xff]
    %v330 = vld [vmem:[#allocation2 + $0x738] sm:$0xff]
    %v331 = vld [vmem:[#allocation2 + $0x740] sm:$0xff]
    %v332 = vld [vmem:[#allocation2 + $0x748] sm:$0xff]
    %v333 = vld [vmem:[#allocation2 + $0x750] sm:$0xff]
    %v334 = vld [vmem:[#allocation2 + $0x758] sm:$0xff]
    %v335 = vld [vmem:[#allocation2 + $0x760] sm:$0xff]
    %v336 = vld [vmem:[#allocation2 + $0x768] sm:$0xff]
    %v337 = vld [vmem:[#allocation2 + $0x770] sm:$0xff]
    %v338 = vld [vmem:[#allocation2 + $0x778] sm:$0xff]
    %v339 = vld [vmem:[#allocation2 + $0x780] sm:$0xff]
    %v340 = vld [vmem:[#allocation2 + $0x788] sm:$0xff]
    %v341 = vld [vmem:[#allocation2 + $0x790] sm:$0xff]
    %v342 = vld [vmem:[#allocation2 + $0x798] sm:$0xff]
    %v343 = vld [vmem:[#allocation2 + $0x7a0] sm:$0xff]
    %v344 = vld [vmem:[#allocation2 + $0x7a8] sm:$0xff]
    %v345 = vld [vmem:[#allocation2 + $0x7b0] sm:$0xff]
    %v346 = vld [vmem:[#allocation2 + $0x7b8] sm:$0xff]
    %v347 = vld [vmem:[#allocation2 + $0x7c0] sm:$0xff]
    %v348 = vld [vmem:[#allocation2 + $0x7c8] sm:$0xff]
    %v349 = vld [vmem:[#allocation2 + $0x7d0] sm:$0xff]
    %v350 = vld [vmem:[#allocation2 + $0x7d8] sm:$0xff]
    %v351 = vld [vmem:[#allocation2 + $0x7e0] sm:$0xff]
    %v352 = vld [vmem:[#allocation2 + $0x7e8] sm:$0xff]
    %v353 = vld [vmem:[#allocation2 + $0x7f0] sm:$0xff]
    %v354 = vld [vmem:[#allocation2 + $0x7f8] sm:$0xff]
    %v355 = vld [vmem:[#allocation2 + $0x800] sm:$0xff]
    %v356 = vld [vmem:[#allocation2 + $0x808] sm:$0xff]
    %v357 = vld [vmem:[#allocation2 + $0x810] sm:$0xff]
    %v358 = vld [vmem:[#allocation2 + $0x818] sm:$0xff]
    %v359 = vld [vmem:[#allocation2 + $0x820] sm:$0xff]
    %v360 = vld [vmem:[#allocation2 + $0x828] sm:$0xff]
    %v361 = vld [vmem:[#allocation2 + $0x830] sm:$0xff]
    %v362 = vld [vmem:[#allocation2 + $0x838] sm:$0xff]
    %v363 = vld [vmem:[#allocation2 + $0x840] sm:$0xff]
    %v364 = vld [vmem:[#allocation2 + $0x848] sm:$0xff]
    %v365 = vld [vmem:[#allocation2 + $0x850] sm:$0xff]
    %v366 = vld [vmem:[#allocation2 + $0x858] sm:$0xff]
    %v367 = vld [vmem:[#allocation2 + $0x860] sm:$0xff]
    %v368 = vld [vmem:[#allocation2 + $0x868] sm:$0xff]
    %v369 = vld [vmem:[#allocation2 + $0x870] sm:$0xff]
    %v370 = vld [vmem:[#allocation2 + $0x878] sm:$0xff]
    %v371 = vld [vmem:[#allocation2 + $0x880] sm:$0xff]
    %v372 = vld [vmem:[#allocation2 + $0x888] sm:$0xff]
    %v373 = vld [vmem:[#allocation2 + $0x890] sm:$0xff]
    %v374 = vld [vmem:[#allocation2 + $0x898] sm:$0xff]
    %v375 = vld [vmem:[#allocation2 + $0x8a0] sm:$0xff]
    %v376 = vld [vmem:[#allocation2 + $0x8a8] sm:$0xff]
    %v377 = vld [vmem:[#allocation2 + $0x8b0] sm:$0xff]
    %v378 = vld [vmem:[#allocation2 + $0x8b8] sm:$0xff]
    %v379 = vld [vmem:[#allocation2 + $0x8c0] sm:$0xff]
    %v380 = vld [vmem:[#allocation2 + $0x8c8] sm:$0xff]
    %v381 = vld [vmem:[#allocation2 + $0x8d0] sm:$0xff]
    %v382 = vld [vmem:[#allocation2 + $0x8d8] sm:$0xff]
    %v383 = vld [vmem:[#allocation2 + $0x8e0] sm:$0xff]
    %v384 = vld [vmem:[#allocation2 + $0x8e8] sm:$0xff]
    %v385 = vld [vmem:[#allocation2 + $0x8f0] sm:$0xff]
    %v386 = vld [vmem:[#allocation2 + $0x8f8] sm:$0xff]
    %v387 = vld [vmem:[#allocation2 + $0x900] sm:$0xff]
    %v388 = vld [vmem:[#allocation2 + $0x908] sm:$0xff]
    %v389 = vld [vmem:[#allocation2 + $0x910] sm:$0xff]
    %v390 = vld [vmem:[#allocation2 + $0x918] sm:$0xff]
    %v391 = vld [vmem:[#allocation2 + $0x920] sm:$0xff]
    %v392 = vld [vmem:[#allocation2 + $0x928] sm:$0xff]
    %v393 = vld [vmem:[#allocation2 + $0x930] sm:$0xff]
    %v394 = vld [vmem:[#allocation2 + $0x938] sm:$0xff]
    %v395 = vld [vmem:[#allocation2 + $0x940] sm:$0xff]
    %v396 = vld [vmem:[#allocation2 + $0x948] sm:$0xff]
    %v397 = vld [vmem:[#allocation2 + $0x950] sm:$0xff]
    %v398 = vld [vmem:[#allocation2 + $0x958] sm:$0xff]
    %v399 = vld [vmem:[#allocation2 + $0x960] sm:$0xff]
    %v400 = vld [vmem:[#allocation2 + $0x968] sm:$0xff]
    %v401 = vld [vmem:[#allocation2 + $0x970] sm:$0xff]
    %v402 = vld [vmem:[#allocation2 + $0x978] sm:$0xff]
    %v403 = vld [vmem:[#allocation2 + $0x980] sm:$0xff]
    %v404 = vld [vmem:[#allocation2 + $0x988] sm:$0xff]
    %v405 = vld [vmem:[#allocation2 + $0x990] sm:$0xff]
    %v406 = vld [vmem:[#allocation2 + $0x998] sm:$0xff]
    %v407 = vld [vmem:[#allocation2 + $0x9a0] sm:$0xff]
    %v408 = vld [vmem:[#allocation2 + $0x9a8] sm:$0xff]
    %v409 = vld [vmem:[#allocation2 + $0x9b0] sm:$0xff]
    %v410 = vld [vmem:[#allocation2 + $0x9b8] sm:$0xff]
    %v411 = vld [vmem:[#allocation2 + $0x9c0] sm:$0xff]
    %v412 = vld [vmem:[#allocation2 + $0x9c8] sm:$0xff]
    %v413 = vld [vmem:[#allocation2 + $0x9d0] sm:$0xff]
    %v414 = vld [vmem:[#allocation2 + $0x9d8] sm:$0xff]
    %v415 = vld [vmem:[#allocation2 + $0x9e0] sm:$0xff]
    %v416 = vld [vmem:[#allocation2 + $0x9e8] sm:$0xff]
    %v417 = vld [vmem:[#allocation2 + $0x9f0] sm:$0xff]
    %v418 = vld [vmem:[#allocation2 + $0x9f8] sm:$0xff]
    %v419 = vld [vmem:[#allocation4] sm:$0xf]
    %v421 = vlaneseq
    %v422 = vshrl.u32 %v421, 7
    %v423 = vsub.s32 0, %v422
    %v424 = vrot.slane %v419, %v423
    %v425 = vlaneseq
    %v426 = vshrl.u32 %v425, 7
    %v427 = vsub.s32 1, %v426
    %v428 = vrot.slane %v419, %v427
    %v429 = vlaneseq
    %v430 = vshrl.u32 %v429, 7
    %v431 = vsub.s32 2, %v430
    %v432 = vrot.slane %v419, %v431
    %v433 = vlaneseq
    %v434 = vshrl.u32 %v433, 7
    %v435 = vsub.s32 3, %v434
    %v436 = vrot.slane %v419, %v435
    %v451 = vunpack.c.l.b16 %v89
    %v452 = vunpack.c.h.b16 %v89
    %v453 = vunpack.c.l.b16 %v90
    %v454 = vunpack.c.h.b16 %v90
    %v455 = vunpack.c.l.b16 %v91
    %v456 = vunpack.c.h.b16 %v91
    %v457 = vunpack.c.l.b16 %v92
    %v458 = vunpack.c.h.b16 %v92
    %v459 = vunpack.c.l.b16 %v93
    %v460 = vunpack.c.h.b16 %v93
    %v461 = vunpack.c.l.b16 %v94
    %v462 = vunpack.c.h.b16 %v94
    %v463 = vunpack.c.l.b16 %v95
    %v464 = vunpack.c.h.b16 %v95
    %v465 = vunpack.c.l.b16 %v96
    %v466 = vunpack.c.h.b16 %v96
    %v467 = vunpack.c.l.b16 %v97
    %v468 = vunpack.c.h.b16 %v97
    %v469 = vunpack.c.l.b16 %v98
    %v470 = vunpack.c.h.b16 %v98
    %v471 = vpack.c.b16 %v461, %v451
    %v472 = vpack.c.b16 %v462, %v452
    %v473 = vpack.c.b16 %v463, %v453
    %v474 = vpack.c.b16 %v464, %v454
    %v475 = vpack.c.b16 %v465, %v455
    %v476 = vpack.c.b16 %v466, %v456
    %v477 = vpack.c.b16 %v467, %v457
    %v478 = vpack.c.b16 %v468, %v458
    %v479 = vpack.c.b16 %v469, %v459
    %v480 = vpack.c.b16 %v470, %v460
    %v811 = vunpack.c.l.b16 %v99
    %v812 = vunpack.c.h.b16 %v99
    %v813 = vunpack.c.l.b16 %v100
    %v814 = vunpack.c.h.b16 %v100
    %v815 = vunpack.c.l.b16 %v101
    %v816 = vunpack.c.h.b16 %v101
    %v817 = vunpack.c.l.b16 %v102
    %v818 = vunpack.c.h.b16 %v102
    %v819 = vunpack.c.l.b16 %v103
    %v820 = vunpack.c.h.b16 %v103
    %v821 = vunpack.c.l.b16 %v104
    %v822 = vunpack.c.h.b16 %v104
    %v823 = vunpack.c.l.b16 %v105
    %v824 = vunpack.c.h.b16 %v105
    %v825 = vunpack.c.l.b16 %v106
    %v826 = vunpack.c.h.b16 %v106
    %v827 = vunpack.c.l.b16 %v107
    %v828 = vunpack.c.h.b16 %v107
    %v829 = vunpack.c.l.b16 %v108
    %v830 = vunpack.c.h.b16 %v108
    %v831 = vunpack.c.l.b16 %v109
    %v832 = vunpack.c.h.b16 %v109
    %v833 = vunpack.c.l.b16 %v110
    %v834 = vunpack.c.h.b16 %v110
    %v835 = vunpack.c.l.b16 %v111
    %v836 = vunpack.c.h.b16 %v111
    %v837 = vunpack.c.l.b16 %v112
    %v838 = vunpack.c.h.b16 %v112
    %v839 = vunpack.c.l.b16 %v113
    %v840 = vunpack.c.h.b16 %v113
    %v841 = vunpack.c.l.b16 %v114
    %v842 = vunpack.c.h.b16 %v114
    %v843 = vunpack.c.l.b16 %v115
    %v844 = vunpack.c.h.b16 %v115
    %v845 = vunpack.c.l.b16 %v116
    %v846 = vunpack.c.h.b16 %v116
    %v847 = vunpack.c.l.b16 %v117
    %v848 = vunpack.c.h.b16 %v117
    %v849 = vunpack.c.l.b16 %v118
    %v850 = vunpack.c.h.b16 %v118
    %v851 = vunpack.c.l.b16 %v119
    %v852 = vunpack.c.h.b16 %v119
    %v853 = vunpack.c.l.b16 %v120
    %v854 = vunpack.c.h.b16 %v120
    %v855 = vunpack.c.l.b16 %v121
    %v856 = vunpack.c.h.b16 %v121
    %v857 = vunpack.c.l.b16 %v122
    %v858 = vunpack.c.h.b16 %v122
    %v859 = vunpack.c.l.b16 %v123
    %v860 = vunpack.c.h.b16 %v123
    %v861 = vunpack.c.l.b16 %v124
    %v862 = vunpack.c.h.b16 %v124
    %v863 = vunpack.c.l.b16 %v125
    %v864 = vunpack.c.h.b16 %v125
    %v865 = vunpack.c.l.b16 %v126
    %v866 = vunpack.c.h.b16 %v126
    %v867 = vunpack.c.l.b16 %v127
    %v868 = vunpack.c.h.b16 %v127
    %v869 = vunpack.c.l.b16 %v128
    %v870 = vunpack.c.h.b16 %v128
    %v871 = vunpack.c.l.b16 %v129
    %v872 = vunpack.c.h.b16 %v129
    %v873 = vunpack.c.l.b16 %v130
    %v874 = vunpack.c.h.b16 %v130
    %v875 = vunpack.c.l.b16 %v131
    %v876 = vunpack.c.h.b16 %v131
    %v877 = vunpack.c.l.b16 %v132
    %v878 = vunpack.c.h.b16 %v132
    %v879 = vunpack.c.l.b16 %v133
    %v880 = vunpack.c.h.b16 %v133
    %v881 = vunpack.c.l.b16 %v134
    %v882 = vunpack.c.h.b16 %v134
    %v883 = vunpack.c.l.b16 %v135
    %v884 = vunpack.c.h.b16 %v135
    %v885 = vunpack.c.l.b16 %v136
    %v886 = vunpack.c.h.b16 %v136
    %v887 = vunpack.c.l.b16 %v137
    %v888 = vunpack.c.h.b16 %v137
    %v889 = vunpack.c.l.b16 %v138
    %v890 = vunpack.c.h.b16 %v138
    %v891 = vunpack.c.l.b16 %v139
    %v892 = vunpack.c.h.b16 %v139
    %v893 = vunpack.c.l.b16 %v140
    %v894 = vunpack.c.h.b16 %v140
    %v895 = vunpack.c.l.b16 %v141
    %v896 = vunpack.c.h.b16 %v141
    %v897 = vunpack.c.l.b16 %v142
    %v898 = vunpack.c.h.b16 %v142
    %v899 = vunpack.c.l.b16 %v143
    %v900 = vunpack.c.h.b16 %v143
    %v901 = vunpack.c.l.b16 %v144
    %v902 = vunpack.c.h.b16 %v144
    %v903 = vunpack.c.l.b16 %v145
    %v904 = vunpack.c.h.b16 %v145
    %v905 = vunpack.c.l.b16 %v146
    %v906 = vunpack.c.h.b16 %v146
    %v907 = vunpack.c.l.b16 %v147
    %v908 = vunpack.c.h.b16 %v147
    %v909 = vunpack.c.l.b16 %v148
    %v910 = vunpack.c.h.b16 %v148
    %v911 = vunpack.c.l.b16 %v149
    %v912 = vunpack.c.h.b16 %v149
    %v913 = vunpack.c.l.b16 %v150
    %v914 = vunpack.c.h.b16 %v150
    %v915 = vunpack.c.l.b16 %v151
    %v916 = vunpack.c.h.b16 %v151
    %v917 = vunpack.c.l.b16 %v152
    %v918 = vunpack.c.h.b16 %v152
    %v919 = vunpack.c.l.b16 %v153
    %v920 = vunpack.c.h.b16 %v153
    %v921 = vunpack.c.l.b16 %v154
    %v922 = vunpack.c.h.b16 %v154
    %v923 = vunpack.c.l.b16 %v155
    %v924 = vunpack.c.h.b16 %v155
    %v925 = vunpack.c.l.b16 %v156
    %v926 = vunpack.c.h.b16 %v156
    %v927 = vunpack.c.l.b16 %v157
    %v928 = vunpack.c.h.b16 %v157
    %v929 = vunpack.c.l.b16 %v158
    %v930 = vunpack.c.h.b16 %v158
    %v931 = vunpack.c.l.b16 %v159
    %v932 = vunpack.c.h.b16 %v159
    %v933 = vunpack.c.l.b16 %v160
    %v934 = vunpack.c.h.b16 %v160
    %v935 = vunpack.c.l.b16 %v161
    %v936 = vunpack.c.h.b16 %v161
    %v937 = vunpack.c.l.b16 %v162
    %v938 = vunpack.c.h.b16 %v162
    %v939 = vunpack.c.l.b16 %v163
    %v940 = vunpack.c.h.b16 %v163
    %v941 = vunpack.c.l.b16 %v164
    %v942 = vunpack.c.h.b16 %v164
    %v943 = vunpack.c.l.b16 %v165
    %v944 = vunpack.c.h.b16 %v165
    %v945 = vunpack.c.l.b16 %v166
    %v946 = vunpack.c.h.b16 %v166
    %v947 = vunpack.c.l.b16 %v167
    %v948 = vunpack.c.h.b16 %v167
    %v949 = vunpack.c.l.b16 %v168
    %v950 = vunpack.c.h.b16 %v168
    %v951 = vunpack.c.l.b16 %v169
    %v952 = vunpack.c.h.b16 %v169
    %v953 = vunpack.c.l.b16 %v170
    %v954 = vunpack.c.h.b16 %v170
    %v955 = vunpack.c.l.b16 %v171
    %v956 = vunpack.c.h.b16 %v171
    %v957 = vunpack.c.l.b16 %v172
    %v958 = vunpack.c.h.b16 %v172
    %v959 = vunpack.c.l.b16 %v173
    %v960 = vunpack.c.h.b16 %v173
    %v961 = vunpack.c.l.b16 %v174
    %v962 = vunpack.c.h.b16 %v174
    %v963 = vunpack.c.l.b16 %v175
    %v964 = vunpack.c.h.b16 %v175
    %v965 = vunpack.c.l.b16 %v176
    %v966 = vunpack.c.h.b16 %v176
    %v967 = vunpack.c.l.b16 %v177
    %v968 = vunpack.c.h.b16 %v177
    %v969 = vunpack.c.l.b16 %v178
    %v970 = vunpack.c.h.b16 %v178
    %v971 = vunpack.c.l.b16 %v179
    %v972 = vunpack.c.h.b16 %v179
    %v973 = vunpack.c.l.b16 %v180
    %v974 = vunpack.c.h.b16 %v180
    %v975 = vunpack.c.l.b16 %v181
    %v976 = vunpack.c.h.b16 %v181
    %v977 = vunpack.c.l.b16 %v182
    %v978 = vunpack.c.h.b16 %v182
    %v979 = vunpack.c.l.b16 %v183
    %v980 = vunpack.c.h.b16 %v183
    %v981 = vunpack.c.l.b16 %v184
    %v982 = vunpack.c.h.b16 %v184
    %v983 = vunpack.c.l.b16 %v185
    %v984 = vunpack.c.h.b16 %v185
    %v985 = vunpack.c.l.b16 %v186
    %v986 = vunpack.c.h.b16 %v186
    %v987 = vunpack.c.l.b16 %v187
    %v988 = vunpack.c.h.b16 %v187
    %v989 = vunpack.c.l.b16 %v188
    %v990 = vunpack.c.h.b16 %v188
    %v991 = vunpack.c.l.b16 %v189
    %v992 = vunpack.c.h.b16 %v189
    %v993 = vunpack.c.l.b16 %v190
    %v994 = vunpack.c.h.b16 %v190
    %v995 = vunpack.c.l.b16 %v191
    %v996 = vunpack.c.h.b16 %v191
    %v997 = vunpack.c.l.b16 %v192
    %v998 = vunpack.c.h.b16 %v192
    %v999 = vunpack.c.l.b16 %v193
    %v1000 = vunpack.c.h.b16 %v193
    %v1001 = vunpack.c.l.b16 %v194
    %v1002 = vunpack.c.h.b16 %v194
    %v1003 = vunpack.c.l.b16 %v195
    %v1004 = vunpack.c.h.b16 %v195
    %v1005 = vunpack.c.l.b16 %v196
    %v1006 = vunpack.c.h.b16 %v196
    %v1007 = vunpack.c.l.b16 %v197
    %v1008 = vunpack.c.h.b16 %v197
    %v1009 = vunpack.c.l.b16 %v198
    %v1010 = vunpack.c.h.b16 %v198
    %v1011 = vunpack.c.l.b16 %v199
    %v1012 = vunpack.c.h.b16 %v199
    %v1013 = vunpack.c.l.b16 %v200
    %v1014 = vunpack.c.h.b16 %v200
    %v1015 = vunpack.c.l.b16 %v201
    %v1016 = vunpack.c.h.b16 %v201
    %v1017 = vunpack.c.l.b16 %v202
    %v1018 = vunpack.c.h.b16 %v202
    %v1019 = vunpack.c.l.b16 %v203
    %v1020 = vunpack.c.h.b16 %v203
    %v1021 = vunpack.c.l.b16 %v204
    %v1022 = vunpack.c.h.b16 %v204
    %v1023 = vunpack.c.l.b16 %v205
    %v1024 = vunpack.c.h.b16 %v205
    %v1025 = vunpack.c.l.b16 %v206
    %v1026 = vunpack.c.h.b16 %v206
    %v1027 = vunpack.c.l.b16 %v207
    %v1028 = vunpack.c.h.b16 %v207
    %v1029 = vunpack.c.l.b16 %v208
    %v1030 = vunpack.c.h.b16 %v208
    %v1031 = vunpack.c.l.b16 %v209
    %v1032 = vunpack.c.h.b16 %v209
    %v1033 = vunpack.c.l.b16 %v210
    %v1034 = vunpack.c.h.b16 %v210
    %v1035 = vunpack.c.l.b16 %v211
    %v1036 = vunpack.c.h.b16 %v211
    %v1037 = vunpack.c.l.b16 %v212
    %v1038 = vunpack.c.h.b16 %v212
    %v1039 = vunpack.c.l.b16 %v213
    %v1040 = vunpack.c.h.b16 %v213
    %v1041 = vunpack.c.l.b16 %v214
    %v1042 = vunpack.c.h.b16 %v214
    %v1043 = vunpack.c.l.b16 %v215
    %v1044 = vunpack.c.h.b16 %v215
    %v1045 = vunpack.c.l.b16 %v216
    %v1046 = vunpack.c.h.b16 %v216
    %v1047 = vunpack.c.l.b16 %v217
    %v1048 = vunpack.c.h.b16 %v217
    %v1049 = vunpack.c.l.b16 %v218
    %v1050 = vunpack.c.h.b16 %v218
    %v1051 = vunpack.c.l.b16 %v219
    %v1052 = vunpack.c.h.b16 %v219
    %v1053 = vunpack.c.l.b16 %v220
    %v1054 = vunpack.c.h.b16 %v220
    %v1055 = vunpack.c.l.b16 %v221
    %v1056 = vunpack.c.h.b16 %v221
    %v1057 = vunpack.c.l.b16 %v222
    %v1058 = vunpack.c.h.b16 %v222
    %v1059 = vunpack.c.l.b16 %v223
    %v1060 = vunpack.c.h.b16 %v223
    %v1061 = vunpack.c.l.b16 %v224
    %v1062 = vunpack.c.h.b16 %v224
    %v1063 = vunpack.c.l.b16 %v225
    %v1064 = vunpack.c.h.b16 %v225
    %v1065 = vunpack.c.l.b16 %v226
    %v1066 = vunpack.c.h.b16 %v226
    %v1067 = vunpack.c.l.b16 %v227
    %v1068 = vunpack.c.h.b16 %v227
    %v1069 = vunpack.c.l.b16 %v228
    %v1070 = vunpack.c.h.b16 %v228
    %v1071 = vunpack.c.l.b16 %v229
    %v1072 = vunpack.c.h.b16 %v229
    %v1073 = vunpack.c.l.b16 %v230
    %v1074 = vunpack.c.h.b16 %v230
    %v1075 = vunpack.c.l.b16 %v231
    %v1076 = vunpack.c.h.b16 %v231
    %v1077 = vunpack.c.l.b16 %v232
    %v1078 = vunpack.c.h.b16 %v232
    %v1079 = vunpack.c.l.b16 %v233
    %v1080 = vunpack.c.h.b16 %v233
    %v1081 = vunpack.c.l.b16 %v234
    %v1082 = vunpack.c.h.b16 %v234
    %v1083 = vunpack.c.l.b16 %v235
    %v1084 = vunpack.c.h.b16 %v235
    %v1085 = vunpack.c.l.b16 %v236
    %v1086 = vunpack.c.h.b16 %v236
    %v1087 = vunpack.c.l.b16 %v237
    %v1088 = vunpack.c.h.b16 %v237
    %v1089 = vunpack.c.l.b16 %v238
    %v1090 = vunpack.c.h.b16 %v238
    %v1091 = vunpack.c.l.b16 %v239
    %v1092 = vunpack.c.h.b16 %v239
    %v1093 = vunpack.c.l.b16 %v240
    %v1094 = vunpack.c.h.b16 %v240
    %v1095 = vunpack.c.l.b16 %v241
    %v1096 = vunpack.c.h.b16 %v241
    %v1097 = vunpack.c.l.b16 %v242
    %v1098 = vunpack.c.h.b16 %v242
    %v1099 = vunpack.c.l.b16 %v243
    %v1100 = vunpack.c.h.b16 %v243
    %v1101 = vunpack.c.l.b16 %v244
    %v1102 = vunpack.c.h.b16 %v244
    %v1103 = vunpack.c.l.b16 %v245
    %v1104 = vunpack.c.h.b16 %v245
    %v1105 = vunpack.c.l.b16 %v246
    %v1106 = vunpack.c.h.b16 %v246
    %v1107 = vunpack.c.l.b16 %v247
    %v1108 = vunpack.c.h.b16 %v247
    %v1109 = vunpack.c.l.b16 %v248
    %v1110 = vunpack.c.h.b16 %v248
    %v1111 = vunpack.c.l.b16 %v249
    %v1112 = vunpack.c.h.b16 %v249
    %v1113 = vunpack.c.l.b16 %v250
    %v1114 = vunpack.c.h.b16 %v250
    %v1115 = vunpack.c.l.b16 %v251
    %v1116 = vunpack.c.h.b16 %v251
    %v1117 = vunpack.c.l.b16 %v252
    %v1118 = vunpack.c.h.b16 %v252
    %v1119 = vunpack.c.l.b16 %v253
    %v1120 = vunpack.c.h.b16 %v253
    %v1121 = vunpack.c.l.b16 %v254
    %v1122 = vunpack.c.h.b16 %v254
    %v1123 = vunpack.c.l.b16 %v255
    %v1124 = vunpack.c.h.b16 %v255
    %v1125 = vunpack.c.l.b16 %v256
    %v1126 = vunpack.c.h.b16 %v256
    %v1127 = vunpack.c.l.b16 %v257
    %v1128 = vunpack.c.h.b16 %v257
    %v1129 = vunpack.c.l.b16 %v258
    %v1130 = vunpack.c.h.b16 %v258
    %v1131 = vunpack.c.l.b16 %v259
    %v1132 = vunpack.c.h.b16 %v259
    %v1133 = vunpack.c.l.b16 %v260
    %v1134 = vunpack.c.h.b16 %v260
    %v1135 = vunpack.c.l.b16 %v261
    %v1136 = vunpack.c.h.b16 %v261
    %v1137 = vunpack.c.l.b16 %v262
    %v1138 = vunpack.c.h.b16 %v262
    %v1139 = vunpack.c.l.b16 %v263
    %v1140 = vunpack.c.h.b16 %v263
    %v1141 = vunpack.c.l.b16 %v264
    %v1142 = vunpack.c.h.b16 %v264
    %v1143 = vunpack.c.l.b16 %v265
    %v1144 = vunpack.c.h.b16 %v265
    %v1145 = vunpack.c.l.b16 %v266
    %v1146 = vunpack.c.h.b16 %v266
    %v1147 = vunpack.c.l.b16 %v267
    %v1148 = vunpack.c.h.b16 %v267
    %v1149 = vunpack.c.l.b16 %v268
    %v1150 = vunpack.c.h.b16 %v268
    %v1151 = vunpack.c.l.b16 %v269
    %v1152 = vunpack.c.h.b16 %v269
    %v1153 = vunpack.c.l.b16 %v270
    %v1154 = vunpack.c.h.b16 %v270
    %v1155 = vunpack.c.l.b16 %v271
    %v1156 = vunpack.c.h.b16 %v271
    %v1157 = vunpack.c.l.b16 %v272
    %v1158 = vunpack.c.h.b16 %v272
    %v1159 = vunpack.c.l.b16 %v273
    %v1160 = vunpack.c.h.b16 %v273
    %v1161 = vunpack.c.l.b16 %v274
    %v1162 = vunpack.c.h.b16 %v274
    %v1163 = vunpack.c.l.b16 %v275
    %v1164 = vunpack.c.h.b16 %v275
    %v1165 = vunpack.c.l.b16 %v276
    %v1166 = vunpack.c.h.b16 %v276
    %v1167 = vunpack.c.l.b16 %v277
    %v1168 = vunpack.c.h.b16 %v277
    %v1169 = vunpack.c.l.b16 %v278
    %v1170 = vunpack.c.h.b16 %v278
    %v1171 = vunpack.c.l.b16 %v279
    %v1172 = vunpack.c.h.b16 %v279
    %v1173 = vunpack.c.l.b16 %v280
    %v1174 = vunpack.c.h.b16 %v280
    %v1175 = vunpack.c.l.b16 %v281
    %v1176 = vunpack.c.h.b16 %v281
    %v1177 = vunpack.c.l.b16 %v282
    %v1178 = vunpack.c.h.b16 %v282
    %v1179 = vunpack.c.l.b16 %v283
    %v1180 = vunpack.c.h.b16 %v283
    %v1181 = vunpack.c.l.b16 %v284
    %v1182 = vunpack.c.h.b16 %v284
    %v1183 = vunpack.c.l.b16 %v285
    %v1184 = vunpack.c.h.b16 %v285
    %v1185 = vunpack.c.l.b16 %v286
    %v1186 = vunpack.c.h.b16 %v286
    %v1187 = vunpack.c.l.b16 %v287
    %v1188 = vunpack.c.h.b16 %v287
    %v1189 = vunpack.c.l.b16 %v288
    %v1190 = vunpack.c.h.b16 %v288
    %v1191 = vunpack.c.l.b16 %v289
    %v1192 = vunpack.c.h.b16 %v289
    %v1193 = vunpack.c.l.b16 %v290
    %v1194 = vunpack.c.h.b16 %v290
    %v1195 = vunpack.c.l.b16 %v291
    %v1196 = vunpack.c.h.b16 %v291
    %v1197 = vunpack.c.l.b16 %v292
    %v1198 = vunpack.c.h.b16 %v292
    %v1199 = vunpack.c.l.b16 %v293
    %v1200 = vunpack.c.h.b16 %v293
    %v1201 = vunpack.c.l.b16 %v294
    %v1202 = vunpack.c.h.b16 %v294
    %v1203 = vunpack.c.l.b16 %v295
    %v1204 = vunpack.c.h.b16 %v295
    %v1205 = vunpack.c.l.b16 %v296
    %v1206 = vunpack.c.h.b16 %v296
    %v1207 = vunpack.c.l.b16 %v297
    %v1208 = vunpack.c.h.b16 %v297
    %v1209 = vunpack.c.l.b16 %v298
    %v1210 = vunpack.c.h.b16 %v298
    %v1211 = vunpack.c.l.b16 %v299
    %v1212 = vunpack.c.h.b16 %v299
    %v1213 = vunpack.c.l.b16 %v300
    %v1214 = vunpack.c.h.b16 %v300
    %v1215 = vunpack.c.l.b16 %v301
    %v1216 = vunpack.c.h.b16 %v301
    %v1217 = vunpack.c.l.b16 %v302
    %v1218 = vunpack.c.h.b16 %v302
    %v1219 = vunpack.c.l.b16 %v303
    %v1220 = vunpack.c.h.b16 %v303
    %v1221 = vunpack.c.l.b16 %v304
    %v1222 = vunpack.c.h.b16 %v304
    %v1223 = vunpack.c.l.b16 %v305
    %v1224 = vunpack.c.h.b16 %v305
    %v1225 = vunpack.c.l.b16 %v306
    %v1226 = vunpack.c.h.b16 %v306
    %v1227 = vunpack.c.l.b16 %v307
    %v1228 = vunpack.c.h.b16 %v307
    %v1229 = vunpack.c.l.b16 %v308
    %v1230 = vunpack.c.h.b16 %v308
    %v1231 = vunpack.c.l.b16 %v309
    %v1232 = vunpack.c.h.b16 %v309
    %v1233 = vunpack.c.l.b16 %v310
    %v1234 = vunpack.c.h.b16 %v310
    %v1235 = vunpack.c.l.b16 %v311
    %v1236 = vunpack.c.h.b16 %v311
    %v1237 = vunpack.c.l.b16 %v312
    %v1238 = vunpack.c.h.b16 %v312
    %v1239 = vunpack.c.l.b16 %v313
    %v1240 = vunpack.c.h.b16 %v313
    %v1241 = vunpack.c.l.b16 %v314
    %v1242 = vunpack.c.h.b16 %v314
    %v1243 = vunpack.c.l.b16 %v315
    %v1244 = vunpack.c.h.b16 %v315
    %v1245 = vunpack.c.l.b16 %v316
    %v1246 = vunpack.c.h.b16 %v316
    %v1247 = vunpack.c.l.b16 %v317
    %v1248 = vunpack.c.h.b16 %v317
    %v1249 = vunpack.c.l.b16 %v318
    %v1250 = vunpack.c.h.b16 %v318
    %v1251 = vunpack.c.l.b16 %v319
    %v1252 = vunpack.c.h.b16 %v319
    %v1253 = vunpack.c.l.b16 %v320
    %v1254 = vunpack.c.h.b16 %v320
    %v1255 = vunpack.c.l.b16 %v321
    %v1256 = vunpack.c.h.b16 %v321
    %v1257 = vunpack.c.l.b16 %v322
    %v1258 = vunpack.c.h.b16 %v322
    %v1259 = vunpack.c.l.b16 %v323
    %v1260 = vunpack.c.h.b16 %v323
    %v1261 = vunpack.c.l.b16 %v324
    %v1262 = vunpack.c.h.b16 %v324
    %v1263 = vunpack.c.l.b16 %v325
    %v1264 = vunpack.c.h.b16 %v325
    %v1265 = vunpack.c.l.b16 %v326
    %v1266 = vunpack.c.h.b16 %v326
    %v1267 = vunpack.c.l.b16 %v327
    %v1268 = vunpack.c.h.b16 %v327
    %v1269 = vunpack.c.l.b16 %v328
    %v1270 = vunpack.c.h.b16 %v328
    %v1271 = vunpack.c.l.b16 %v329
    %v1272 = vunpack.c.h.b16 %v329
    %v1273 = vunpack.c.l.b16 %v330
    %v1274 = vunpack.c.h.b16 %v330
    %v1275 = vunpack.c.l.b16 %v331
    %v1276 = vunpack.c.h.b16 %v331
    %v1277 = vunpack.c.l.b16 %v332
    %v1278 = vunpack.c.h.b16 %v332
    %v1279 = vunpack.c.l.b16 %v333
    %v1280 = vunpack.c.h.b16 %v333
    %v1281 = vunpack.c.l.b16 %v334
    %v1282 = vunpack.c.h.b16 %v334
    %v1283 = vunpack.c.l.b16 %v335
    %v1284 = vunpack.c.h.b16 %v335
    %v1285 = vunpack.c.l.b16 %v336
    %v1286 = vunpack.c.h.b16 %v336
    %v1287 = vunpack.c.l.b16 %v337
    %v1288 = vunpack.c.h.b16 %v337
    %v1289 = vunpack.c.l.b16 %v338
    %v1290 = vunpack.c.h.b16 %v338
    %v1291 = vunpack.c.l.b16 %v339
    %v1292 = vunpack.c.h.b16 %v339
    %v1293 = vunpack.c.l.b16 %v340
    %v1294 = vunpack.c.h.b16 %v340
    %v1295 = vunpack.c.l.b16 %v341
    %v1296 = vunpack.c.h.b16 %v341
    %v1297 = vunpack.c.l.b16 %v342
    %v1298 = vunpack.c.h.b16 %v342
    %v1299 = vunpack.c.l.b16 %v343
    %v1300 = vunpack.c.h.b16 %v343
    %v1301 = vunpack.c.l.b16 %v344
    %v1302 = vunpack.c.h.b16 %v344
    %v1303 = vunpack.c.l.b16 %v345
    %v1304 = vunpack.c.h.b16 %v345
    %v1305 = vunpack.c.l.b16 %v346
    %v1306 = vunpack.c.h.b16 %v346
    %v1307 = vunpack.c.l.b16 %v347
    %v1308 = vunpack.c.h.b16 %v347
    %v1309 = vunpack.c.l.b16 %v348
    %v1310 = vunpack.c.h.b16 %v348
    %v1311 = vunpack.c.l.b16 %v349
    %v1312 = vunpack.c.h.b16 %v349
    %v1313 = vunpack.c.l.b16 %v350
    %v1314 = vunpack.c.h.b16 %v350
    %v1315 = vunpack.c.l.b16 %v351
    %v1316 = vunpack.c.h.b16 %v351
    %v1317 = vunpack.c.l.b16 %v352
    %v1318 = vunpack.c.h.b16 %v352
    %v1319 = vunpack.c.l.b16 %v353
    %v1320 = vunpack.c.h.b16 %v353
    %v1321 = vunpack.c.l.b16 %v354
    %v1322 = vunpack.c.h.b16 %v354
    %v1323 = vunpack.c.l.b16 %v355
    %v1324 = vunpack.c.h.b16 %v355
    %v1325 = vunpack.c.l.b16 %v356
    %v1326 = vunpack.c.h.b16 %v356
    %v1327 = vunpack.c.l.b16 %v357
    %v1328 = vunpack.c.h.b16 %v357
    %v1329 = vunpack.c.l.b16 %v358
    %v1330 = vunpack.c.h.b16 %v358
    %v1331 = vunpack.c.l.b16 %v359
    %v1332 = vunpack.c.h.b16 %v359
    %v1333 = vunpack.c.l.b16 %v360
    %v1334 = vunpack.c.h.b16 %v360
    %v1335 = vunpack.c.l.b16 %v361
    %v1336 = vunpack.c.h.b16 %v361
    %v1337 = vunpack.c.l.b16 %v362
    %v1338 = vunpack.c.h.b16 %v362
    %v1339 = vunpack.c.l.b16 %v363
    %v1340 = vunpack.c.h.b16 %v363
    %v1341 = vunpack.c.l.b16 %v364
    %v1342 = vunpack.c.h.b16 %v364
    %v1343 = vunpack.c.l.b16 %v365
    %v1344 = vunpack.c.h.b16 %v365
    %v1345 = vunpack.c.l.b16 %v366
    %v1346 = vunpack.c.h.b16 %v366
    %v1347 = vunpack.c.l.b16 %v367
    %v1348 = vunpack.c.h.b16 %v367
    %v1349 = vunpack.c.l.b16 %v368
    %v1350 = vunpack.c.h.b16 %v368
    %v1351 = vunpack.c.l.b16 %v369
    %v1352 = vunpack.c.h.b16 %v369
    %v1353 = vunpack.c.l.b16 %v370
    %v1354 = vunpack.c.h.b16 %v370
    %v1355 = vunpack.c.l.b16 %v371
    %v1356 = vunpack.c.h.b16 %v371
    %v1357 = vunpack.c.l.b16 %v372
    %v1358 = vunpack.c.h.b16 %v372
    %v1359 = vunpack.c.l.b16 %v373
    %v1360 = vunpack.c.h.b16 %v373
    %v1361 = vunpack.c.l.b16 %v374
    %v1362 = vunpack.c.h.b16 %v374
    %v1363 = vunpack.c.l.b16 %v375
    %v1364 = vunpack.c.h.b16 %v375
    %v1365 = vunpack.c.l.b16 %v376
    %v1366 = vunpack.c.h.b16 %v376
    %v1367 = vunpack.c.l.b16 %v377
    %v1368 = vunpack.c.h.b16 %v377
    %v1369 = vunpack.c.l.b16 %v378
    %v1370 = vunpack.c.h.b16 %v378
    %v1371 = vunpack.c.l.b16 %v379
    %v1372 = vunpack.c.h.b16 %v379
    %v1373 = vunpack.c.l.b16 %v380
    %v1374 = vunpack.c.h.b16 %v380
    %v1375 = vunpack.c.l.b16 %v381
    %v1376 = vunpack.c.h.b16 %v381
    %v1377 = vunpack.c.l.b16 %v382
    %v1378 = vunpack.c.h.b16 %v382
    %v1379 = vunpack.c.l.b16 %v383
    %v1380 = vunpack.c.h.b16 %v383
    %v1381 = vunpack.c.l.b16 %v384
    %v1382 = vunpack.c.h.b16 %v384
    %v1383 = vunpack.c.l.b16 %v385
    %v1384 = vunpack.c.h.b16 %v385
    %v1385 = vunpack.c.l.b16 %v386
    %v1386 = vunpack.c.h.b16 %v386
    %v1387 = vunpack.c.l.b16 %v387
    %v1388 = vunpack.c.h.b16 %v387
    %v1389 = vunpack.c.l.b16 %v388
    %v1390 = vunpack.c.h.b16 %v388
    %v1391 = vunpack.c.l.b16 %v389
    %v1392 = vunpack.c.h.b16 %v389
    %v1393 = vunpack.c.l.b16 %v390
    %v1394 = vunpack.c.h.b16 %v390
    %v1395 = vunpack.c.l.b16 %v391
    %v1396 = vunpack.c.h.b16 %v391
    %v1397 = vunpack.c.l.b16 %v392
    %v1398 = vunpack.c.h.b16 %v392
    %v1399 = vunpack.c.l.b16 %v393
    %v1400 = vunpack.c.h.b16 %v393
    %v1401 = vunpack.c.l.b16 %v394
    %v1402 = vunpack.c.h.b16 %v394
    %v1403 = vunpack.c.l.b16 %v395
    %v1404 = vunpack.c.h.b16 %v395
    %v1405 = vunpack.c.l.b16 %v396
    %v1406 = vunpack.c.h.b16 %v396
    %v1407 = vunpack.c.l.b16 %v397
    %v1408 = vunpack.c.h.b16 %v397
    %v1409 = vunpack.c.l.b16 %v398
    %v1410 = vunpack.c.h.b16 %v398
    %v1411 = vunpack.c.l.b16 %v399
    %v1412 = vunpack.c.h.b16 %v399
    %v1413 = vunpack.c.l.b16 %v400
    %v1414 = vunpack.c.h.b16 %v400
    %v1415 = vunpack.c.l.b16 %v401
    %v1416 = vunpack.c.h.b16 %v401
    %v1417 = vunpack.c.l.b16 %v402
    %v1418 = vunpack.c.h.b16 %v402
    %v1419 = vunpack.c.l.b16 %v403
    %v1420 = vunpack.c.h.b16 %v403
    %v1421 = vunpack.c.l.b16 %v404
    %v1422 = vunpack.c.h.b16 %v404
    %v1423 = vunpack.c.l.b16 %v405
    %v1424 = vunpack.c.h.b16 %v405
    %v1425 = vunpack.c.l.b16 %v406
    %v1426 = vunpack.c.h.b16 %v406
    %v1427 = vunpack.c.l.b16 %v407
    %v1428 = vunpack.c.h.b16 %v407
    %v1429 = vunpack.c.l.b16 %v408
    %v1430 = vunpack.c.h.b16 %v408
    %v1431 = vunpack.c.l.b16 %v409
    %v1432 = vunpack.c.h.b16 %v409
    %v1433 = vunpack.c.l.b16 %v410
    %v1434 = vunpack.c.h.b16 %v410
    %v1435 = vunpack.c.l.b16 %v411
    %v1436 = vunpack.c.h.b16 %v411
    %v1437 = vunpack.c.l.b16 %v412
    %v1438 = vunpack.c.h.b16 %v412
    %v1439 = vunpack.c.l.b16 %v413
    %v1440 = vunpack.c.h.b16 %v413
    %v1441 = vunpack.c.l.b16 %v414
    %v1442 = vunpack.c.h.b16 %v414
    %v1443 = vunpack.c.l.b16 %v415
    %v1444 = vunpack.c.h.b16 %v415
    %v1445 = vunpack.c.l.b16 %v416
    %v1446 = vunpack.c.h.b16 %v416
    %v1447 = vunpack.c.l.b16 %v417
    %v1448 = vunpack.c.h.b16 %v417
    %v1449 = vunpack.c.l.b16 %v418
    %v1450 = vunpack.c.h.b16 %v418
    %v1451 = vpack.c.b16 %v815, %v811
    %v1452 = vpack.c.b16 %v816, %v812
    %v1453 = vpack.c.b16 %v817, %v813
    %v1454 = vpack.c.b16 %v818, %v814
    %v1455 = vpack.c.b16 %v823, %v819
    %v1456 = vpack.c.b16 %v824, %v820
    %v1457 = vpack.c.b16 %v825, %v821
    %v1458 = vpack.c.b16 %v826, %v822
    %v1459 = vpack.c.b16 %v831, %v827
    %v1460 = vpack.c.b16 %v832, %v828
    %v1461 = vpack.c.b16 %v833, %v829
    %v1462 = vpack.c.b16 %v834, %v830
    %v1463 = vpack.c.b16 %v839, %v835
    %v1464 = vpack.c.b16 %v840, %v836
    %v1465 = vpack.c.b16 %v841, %v837
    %v1466 = vpack.c.b16 %v842, %v838
    %v1467 = vpack.c.b16 %v847, %v843
    %v1468 = vpack.c.b16 %v848, %v844
    %v1469 = vpack.c.b16 %v849, %v845
    %v1470 = vpack.c.b16 %v850, %v846
    %v1471 = vpack.c.b16 %v855, %v851
    %v1472 = vpack.c.b16 %v856, %v852
    %v1473 = vpack.c.b16 %v857, %v853
    %v1474 = vpack.c.b16 %v858, %v854
    %v1475 = vpack.c.b16 %v863, %v859
    %v1476 = vpack.c.b16 %v864, %v860
    %v1477 = vpack.c.b16 %v865, %v861
    %v1478 = vpack.c.b16 %v866, %v862
    %v1479 = vpack.c.b16 %v871, %v867
    %v1480 = vpack.c.b16 %v872, %v868
    %v1481 = vpack.c.b16 %v873, %v869
    %v1482 = vpack.c.b16 %v874, %v870
    %v1483 = vpack.c.b16 %v879, %v875
    %v1484 = vpack.c.b16 %v880, %v876
    %v1485 = vpack.c.b16 %v881, %v877
    %v1486 = vpack.c.b16 %v882, %v878
    %v1487 = vpack.c.b16 %v887, %v883
    %v1488 = vpack.c.b16 %v888, %v884
    %v1489 = vpack.c.b16 %v889, %v885
    %v1490 = vpack.c.b16 %v890, %v886
    %v1491 = vpack.c.b16 %v895, %v891
    %v1492 = vpack.c.b16 %v896, %v892
    %v1493 = vpack.c.b16 %v897, %v893
    %v1494 = vpack.c.b16 %v898, %v894
    %v1495 = vpack.c.b16 %v903, %v899
    %v1496 = vpack.c.b16 %v904, %v900
    %v1497 = vpack.c.b16 %v905, %v901
    %v1498 = vpack.c.b16 %v906, %v902
    %v1499 = vpack.c.b16 %v911, %v907
    %v1500 = vpack.c.b16 %v912, %v908
    %v1501 = vpack.c.b16 %v913, %v909
    %v1502 = vpack.c.b16 %v914, %v910
    %v1503 = vpack.c.b16 %v919, %v915
    %v1504 = vpack.c.b16 %v920, %v916
    %v1505 = vpack.c.b16 %v921, %v917
    %v1506 = vpack.c.b16 %v922, %v918
    %v1507 = vpack.c.b16 %v927, %v923
    %v1508 = vpack.c.b16 %v928, %v924
    %v1509 = vpack.c.b16 %v929, %v925
    %v1510 = vpack.c.b16 %v930, %v926
    %v1511 = vpack.c.b16 %v935, %v931
    %v1512 = vpack.c.b16 %v936, %v932
    %v1513 = vpack.c.b16 %v937, %v933
    %v1514 = vpack.c.b16 %v938, %v934
    %v1515 = vpack.c.b16 %v943, %v939
    %v1516 = vpack.c.b16 %v944, %v940
    %v1517 = vpack.c.b16 %v945, %v941
    %v1518 = vpack.c.b16 %v946, %v942
    %v1519 = vpack.c.b16 %v951, %v947
    %v1520 = vpack.c.b16 %v952, %v948
    %v1521 = vpack.c.b16 %v953, %v949
    %v1522 = vpack.c.b16 %v954, %v950
    %v1523 = vpack.c.b16 %v959, %v955
    %v1524 = vpack.c.b16 %v960, %v956
    %v1525 = vpack.c.b16 %v961, %v957
    %v1526 = vpack.c.b16 %v962, %v958
    %v1527 = vpack.c.b16 %v967, %v963
    %v1528 = vpack.c.b16 %v968, %v964
    %v1529 = vpack.c.b16 %v969, %v965
    %v1530 = vpack.c.b16 %v970, %v966
    %v1531 = vpack.c.b16 %v975, %v971
    %v1532 = vpack.c.b16 %v976, %v972
    %v1533 = vpack.c.b16 %v977, %v973
    %v1534 = vpack.c.b16 %v978, %v974
    %v1535 = vpack.c.b16 %v983, %v979
    %v1536 = vpack.c.b16 %v984, %v980
    %v1537 = vpack.c.b16 %v985, %v981
    %v1538 = vpack.c.b16 %v986, %v982
    %v1539 = vpack.c.b16 %v991, %v987
    %v1540 = vpack.c.b16 %v992, %v988
    %v1541 = vpack.c.b16 %v993, %v989
    %v1542 = vpack.c.b16 %v994, %v990
    %v1543 = vpack.c.b16 %v999, %v995
    %v1544 = vpack.c.b16 %v1000, %v996
    %v1545 = vpack.c.b16 %v1001, %v997
    %v1546 = vpack.c.b16 %v1002, %v998
    %v1547 = vpack.c.b16 %v1007, %v1003
    %v1548 = vpack.c.b16 %v1008, %v1004
    %v1549 = vpack.c.b16 %v1009, %v1005
    %v1550 = vpack.c.b16 %v1010, %v1006
    %v1551 = vpack.c.b16 %v1015, %v1011
    %v1552 = vpack.c.b16 %v1016, %v1012
    %v1553 = vpack.c.b16 %v1017, %v1013
    %v1554 = vpack.c.b16 %v1018, %v1014
    %v1555 = vpack.c.b16 %v1023, %v1019
    %v1556 = vpack.c.b16 %v1024, %v1020
    %v1557 = vpack.c.b16 %v1025, %v1021
    %v1558 = vpack.c.b16 %v1026, %v1022
    %v1559 = vpack.c.b16 %v1031, %v1027
    %v1560 = vpack.c.b16 %v1032, %v1028
    %v1561 = vpack.c.b16 %v1033, %v1029
    %v1562 = vpack.c.b16 %v1034, %v1030
    %v1563 = vpack.c.b16 %v1039, %v1035
    %v1564 = vpack.c.b16 %v1040, %v1036
    %v1565 = vpack.c.b16 %v1041, %v1037
    %v1566 = vpack.c.b16 %v1042, %v1038
    %v1567 = vpack.c.b16 %v1047, %v1043
    %v1568 = vpack.c.b16 %v1048, %v1044
    %v1569 = vpack.c.b16 %v1049, %v1045
    %v1570 = vpack.c.b16 %v1050, %v1046
    %v1571 = vpack.c.b16 %v1055, %v1051
    %v1572 = vpack.c.b16 %v1056, %v1052
    %v1573 = vpack.c.b16 %v1057, %v1053
    %v1574 = vpack.c.b16 %v1058, %v1054
    %v1575 = vpack.c.b16 %v1063, %v1059
    %v1576 = vpack.c.b16 %v1064, %v1060
    %v1577 = vpack.c.b16 %v1065, %v1061
    %v1578 = vpack.c.b16 %v1066, %v1062
    %v1579 = vpack.c.b16 %v1071, %v1067
    %v1580 = vpack.c.b16 %v1072, %v1068
    %v1581 = vpack.c.b16 %v1073, %v1069
    %v1582 = vpack.c.b16 %v1074, %v1070
    %v1583 = vpack.c.b16 %v1079, %v1075
    %v1584 = vpack.c.b16 %v1080, %v1076
    %v1585 = vpack.c.b16 %v1081, %v1077
    %v1586 = vpack.c.b16 %v1082, %v1078
    %v1587 = vpack.c.b16 %v1087, %v1083
    %v1588 = vpack.c.b16 %v1088, %v1084
    %v1589 = vpack.c.b16 %v1089, %v1085
    %v1590 = vpack.c.b16 %v1090, %v1086
    %v1591 = vpack.c.b16 %v1095, %v1091
    %v1592 = vpack.c.b16 %v1096, %v1092
    %v1593 = vpack.c.b16 %v1097, %v1093
    %v1594 = vpack.c.b16 %v1098, %v1094
    %v1595 = vpack.c.b16 %v1103, %v1099
    %v1596 = vpack.c.b16 %v1104, %v1100
    %v1597 = vpack.c.b16 %v1105, %v1101
    %v1598 = vpack.c.b16 %v1106, %v1102
    %v1599 = vpack.c.b16 %v1111, %v1107
    %v1600 = vpack.c.b16 %v1112, %v1108
    %v1601 = vpack.c.b16 %v1113, %v1109
    %v1602 = vpack.c.b16 %v1114, %v1110
    %v1603 = vpack.c.b16 %v1119, %v1115
    %v1604 = vpack.c.b16 %v1120, %v1116
    %v1605 = vpack.c.b16 %v1121, %v1117
    %v1606 = vpack.c.b16 %v1122, %v1118
    %v1607 = vpack.c.b16 %v1127, %v1123
    %v1608 = vpack.c.b16 %v1128, %v1124
    %v1609 = vpack.c.b16 %v1129, %v1125
    %v1610 = vpack.c.b16 %v1130, %v1126
    %v1611 = vpack.c.b16 %v1135, %v1131
    %v1612 = vpack.c.b16 %v1136, %v1132
    %v1613 = vpack.c.b16 %v1137, %v1133
    %v1614 = vpack.c.b16 %v1138, %v1134
    %v1615 = vpack.c.b16 %v1143, %v1139
    %v1616 = vpack.c.b16 %v1144, %v1140
    %v1617 = vpack.c.b16 %v1145, %v1141
    %v1618 = vpack.c.b16 %v1146, %v1142
    %v1619 = vpack.c.b16 %v1151, %v1147
    %v1620 = vpack.c.b16 %v1152, %v1148
    %v1621 = vpack.c.b16 %v1153, %v1149
    %v1622 = vpack.c.b16 %v1154, %v1150
    %v1623 = vpack.c.b16 %v1159, %v1155
    %v1624 = vpack.c.b16 %v1160, %v1156
    %v1625 = vpack.c.b16 %v1161, %v1157
    %v1626 = vpack.c.b16 %v1162, %v1158
    %v1627 = vpack.c.b16 %v1167, %v1163
    %v1628 = vpack.c.b16 %v1168, %v1164
    %v1629 = vpack.c.b16 %v1169, %v1165
    %v1630 = vpack.c.b16 %v1170, %v1166
    %v1631 = vpack.c.b16 %v1175, %v1171
    %v1632 = vpack.c.b16 %v1176, %v1172
    %v1633 = vpack.c.b16 %v1177, %v1173
    %v1634 = vpack.c.b16 %v1178, %v1174
    %v1635 = vpack.c.b16 %v1183, %v1179
    %v1636 = vpack.c.b16 %v1184, %v1180
    %v1637 = vpack.c.b16 %v1185, %v1181
    %v1638 = vpack.c.b16 %v1186, %v1182
    %v1639 = vpack.c.b16 %v1191, %v1187
    %v1640 = vpack.c.b16 %v1192, %v1188
    %v1641 = vpack.c.b16 %v1193, %v1189
    %v1642 = vpack.c.b16 %v1194, %v1190
    %v1643 = vpack.c.b16 %v1199, %v1195
    %v1644 = vpack.c.b16 %v1200, %v1196
    %v1645 = vpack.c.b16 %v1201, %v1197
    %v1646 = vpack.c.b16 %v1202, %v1198
    %v1647 = vpack.c.b16 %v1207, %v1203
    %v1648 = vpack.c.b16 %v1208, %v1204
    %v1649 = vpack.c.b16 %v1209, %v1205
    %v1650 = vpack.c.b16 %v1210, %v1206
    %v1651 = vpack.c.b16 %v1215, %v1211
    %v1652 = vpack.c.b16 %v1216, %v1212
    %v1653 = vpack.c.b16 %v1217, %v1213
    %v1654 = vpack.c.b16 %v1218, %v1214
    %v1655 = vpack.c.b16 %v1223, %v1219
    %v1656 = vpack.c.b16 %v1224, %v1220
    %v1657 = vpack.c.b16 %v1225, %v1221
    %v1658 = vpack.c.b16 %v1226, %v1222
    %v1659 = vpack.c.b16 %v1231, %v1227
    %v1660 = vpack.c.b16 %v1232, %v1228
    %v1661 = vpack.c.b16 %v1233, %v1229
    %v1662 = vpack.c.b16 %v1234, %v1230
    %v1663 = vpack.c.b16 %v1239, %v1235
    %v1664 = vpack.c.b16 %v1240, %v1236
    %v1665 = vpack.c.b16 %v1241, %v1237
    %v1666 = vpack.c.b16 %v1242, %v1238
    %v1667 = vpack.c.b16 %v1247, %v1243
    %v1668 = vpack.c.b16 %v1248, %v1244
    %v1669 = vpack.c.b16 %v1249, %v1245
    %v1670 = vpack.c.b16 %v1250, %v1246
    %v1671 = vpack.c.b16 %v1255, %v1251
    %v1672 = vpack.c.b16 %v1256, %v1252
    %v1673 = vpack.c.b16 %v1257, %v1253
    %v1674 = vpack.c.b16 %v1258, %v1254
    %v1675 = vpack.c.b16 %v1263, %v1259
    %v1676 = vpack.c.b16 %v1264, %v1260
    %v1677 = vpack.c.b16 %v1265, %v1261
    %v1678 = vpack.c.b16 %v1266, %v1262
    %v1679 = vpack.c.b16 %v1271, %v1267
    %v1680 = vpack.c.b16 %v1272, %v1268
    %v1681 = vpack.c.b16 %v1273, %v1269
    %v1682 = vpack.c.b16 %v1274, %v1270
    %v1683 = vpack.c.b16 %v1279, %v1275
    %v1684 = vpack.c.b16 %v1280, %v1276
    %v1685 = vpack.c.b16 %v1281, %v1277
    %v1686 = vpack.c.b16 %v1282, %v1278
    %v1687 = vpack.c.b16 %v1287, %v1283
    %v1688 = vpack.c.b16 %v1288, %v1284
    %v1689 = vpack.c.b16 %v1289, %v1285
    %v1690 = vpack.c.b16 %v1290, %v1286
    %v1691 = vpack.c.b16 %v1295, %v1291
    %v1692 = vpack.c.b16 %v1296, %v1292
    %v1693 = vpack.c.b16 %v1297, %v1293
    %v1694 = vpack.c.b16 %v1298, %v1294
    %v1695 = vpack.c.b16 %v1303, %v1299
    %v1696 = vpack.c.b16 %v1304, %v1300
    %v1697 = vpack.c.b16 %v1305, %v1301
    %v1698 = vpack.c.b16 %v1306, %v1302
    %v1699 = vpack.c.b16 %v1311, %v1307
    %v1700 = vpack.c.b16 %v1312, %v1308
    %v1701 = vpack.c.b16 %v1313, %v1309
    %v1702 = vpack.c.b16 %v1314, %v1310
    %v1703 = vpack.c.b16 %v1319, %v1315
    %v1704 = vpack.c.b16 %v1320, %v1316
    %v1705 = vpack.c.b16 %v1321, %v1317
    %v1706 = vpack.c.b16 %v1322, %v1318
    %v1707 = vpack.c.b16 %v1327, %v1323
    %v1708 = vpack.c.b16 %v1328, %v1324
    %v1709 = vpack.c.b16 %v1329, %v1325
    %v1710 = vpack.c.b16 %v1330, %v1326
    %v1711 = vpack.c.b16 %v1335, %v1331
    %v1712 = vpack.c.b16 %v1336, %v1332
    %v1713 = vpack.c.b16 %v1337, %v1333
    %v1714 = vpack.c.b16 %v1338, %v1334
    %v1715 = vpack.c.b16 %v1343, %v1339
    %v1716 = vpack.c.b16 %v1344, %v1340
    %v1717 = vpack.c.b16 %v1345, %v1341
    %v1718 = vpack.c.b16 %v1346, %v1342
    %v1719 = vpack.c.b16 %v1351, %v1347
    %v1720 = vpack.c.b16 %v1352, %v1348
    %v1721 = vpack.c.b16 %v1353, %v1349
    %v1722 = vpack.c.b16 %v1354, %v1350
    %v1723 = vpack.c.b16 %v1359, %v1355
    %v1724 = vpack.c.b16 %v1360, %v1356
    %v1725 = vpack.c.b16 %v1361, %v1357
    %v1726 = vpack.c.b16 %v1362, %v1358
    %v1727 = vpack.c.b16 %v1367, %v1363
    %v1728 = vpack.c.b16 %v1368, %v1364
    %v1729 = vpack.c.b16 %v1369, %v1365
    %v1730 = vpack.c.b16 %v1370, %v1366
    %v1731 = vpack.c.b16 %v1375, %v1371
    %v1732 = vpack.c.b16 %v1376, %v1372
    %v1733 = vpack.c.b16 %v1377, %v1373
    %v1734 = vpack.c.b16 %v1378, %v1374
    %v1735 = vpack.c.b16 %v1383, %v1379
    %v1736 = vpack.c.b16 %v1384, %v1380
    %v1737 = vpack.c.b16 %v1385, %v1381
    %v1738 = vpack.c.b16 %v1386, %v1382
    %v1739 = vpack.c.b16 %v1391, %v1387
    %v1740 = vpack.c.b16 %v1392, %v1388
    %v1741 = vpack.c.b16 %v1393, %v1389
    %v1742 = vpack.c.b16 %v1394, %v1390
    %v1743 = vpack.c.b16 %v1399, %v1395
    %v1744 = vpack.c.b16 %v1400, %v1396
    %v1745 = vpack.c.b16 %v1401, %v1397
    %v1746 = vpack.c.b16 %v1402, %v1398
    %v1747 = vpack.c.b16 %v1407, %v1403
    %v1748 = vpack.c.b16 %v1408, %v1404
    %v1749 = vpack.c.b16 %v1409, %v1405
    %v1750 = vpack.c.b16 %v1410, %v1406
    %v1751 = vpack.c.b16 %v1415, %v1411
    %v1752 = vpack.c.b16 %v1416, %v1412
    %v1753 = vpack.c.b16 %v1417, %v1413
    %v1754 = vpack.c.b16 %v1418, %v1414
    %v1755 = vpack.c.b16 %v1423, %v1419
    %v1756 = vpack.c.b16 %v1424, %v1420
    %v1757 = vpack.c.b16 %v1425, %v1421
    %v1758 = vpack.c.b16 %v1426, %v1422
    %v1759 = vpack.c.b16 %v1431, %v1427
    %v1760 = vpack.c.b16 %v1432, %v1428
    %v1761 = vpack.c.b16 %v1433, %v1429
    %v1762 = vpack.c.b16 %v1434, %v1430
    %v1763 = vpack.c.b16 %v1439, %v1435
    %v1764 = vpack.c.b16 %v1440, %v1436
    %v1765 = vpack.c.b16 %v1441, %v1437
    %v1766 = vpack.c.b16 %v1442, %v1438
    %v1767 = vpack.c.b16 %v1447, %v1443
    %v1768 = vpack.c.b16 %v1448, %v1444
    %v1769 = vpack.c.b16 %v1449, %v1445
    %v1770 = vpack.c.b16 %v1450, %v1446
    %2091 = vmatprep.subr.bf16.mxu0 %v1452
    %2092 = vmatpush1.bf16.msra.mxu0 %v1451
    %2093 = vmatprep.subr.bf16.mxu0 %v1456
    %2094 = vmatpush1.bf16.msra.mxu0 %v1455
    %2095 = vmatprep.subr.bf16.mxu0 %v1460
    %2096 = vmatpush1.bf16.msra.mxu0 %v1459
    %2097 = vmatprep.subr.bf16.mxu0 %v1464
    %2098 = vmatpush1.bf16.msra.mxu0 %v1463
    %2099 = vmatprep.subr.bf16.mxu0 %v1468
    %2100 = vmatpush1.bf16.msra.mxu0 %v1467
    %2101 = vmatprep.subr.bf16.mxu0 %v1472
    %2102 = vmatpush1.bf16.msra.mxu0 %v1471
    %2103 = vmatprep.subr.bf16.mxu0 %v1476
    %2104 = vmatpush1.bf16.msra.mxu0 %v1475
    %2105 = vmatprep.subr.bf16.mxu0 %v1480
    %2106 = vmatpush1.bf16.msra.mxu0 %v1479
    %2107 = vmatprep.subr.bf16.mxu0 %v1484
    %2108 = vmatpush1.bf16.msra.mxu0 %v1483
    %2109 = vmatprep.subr.bf16.mxu0 %v1488
    %2110 = vmatpush1.bf16.msra.mxu0 %v1487
    %2111 = vmatprep.subr.bf16.mxu0 %v1492
    %2112 = vmatpush1.bf16.msra.mxu0 %v1491
    %2113 = vmatprep.subr.bf16.mxu0 %v1496
    %2114 = vmatpush1.bf16.msra.mxu0 %v1495
    %2115 = vmatprep.subr.bf16.mxu0 %v1500
    %2116 = vmatpush1.bf16.msra.mxu0 %v1499
    %2117 = vmatprep.subr.bf16.mxu0 %v1504
    %2118 = vmatpush1.bf16.msra.mxu0 %v1503
    %2119 = vmatprep.subr.bf16.mxu0 %v1508
    %2120 = vmatpush1.bf16.msra.mxu0 %v1507
    %2121 = vmatprep.subr.bf16.mxu0 %v1512
    %2122 = vmatpush1.bf16.msra.mxu0 %v1511
    %2123 = vmatprep.mubr.bf16.mxu0 %v472
    %2124 = vmatmul.mubr.bf16.gmra.mrb[0].mxu0 %v471
    %v2125 = vpop.f32.mrb[0].mxu0
    %v2126 = vadd.f32 %v424, %v2125
    %v2127 = vpop.f32.mrb[0].mxu0
    %v2128 = vadd.f32 %v428, %v2127
    %v2129 = vpop.f32.mrb[0].mxu0
    %v2130 = vadd.f32 %v424, %v2129
    %v2131 = vpop.f32.mrb[0].mxu0
    %v2132 = vadd.f32 %v428, %v2131
    %2133 = vdwg.mxu0
    %2134 = vmatprep.subr.bf16.mxu0 %v1516
    %2135 = vmatpush1.bf16.msra.mxu0 %v1515
    %2136 = vmatprep.subr.bf16.mxu0 %v1520
    %2137 = vmatpush1.bf16.msra.mxu0 %v1519
    %2138 = vmatprep.subr.bf16.mxu0 %v1524
    %2139 = vmatpush1.bf16.msra.mxu0 %v1523
    %2140 = vmatprep.subr.bf16.mxu0 %v1528
    %2141 = vmatpush1.bf16.msra.mxu0 %v1527
    %2142 = vmatprep.subr.bf16.mxu0 %v1532
    %2143 = vmatpush1.bf16.msra.mxu0 %v1531
    %2144 = vmatprep.subr.bf16.mxu0 %v1536
    %2145 = vmatpush1.bf16.msra.mxu0 %v1535
    %2146 = vmatprep.subr.bf16.mxu0 %v1540
    %2147 = vmatpush1.bf16.msra.mxu0 %v1539
    %2148 = vmatprep.subr.bf16.mxu0 %v1544
    %2149 = vmatpush1.bf16.msra.mxu0 %v1543
    %2150 = vmatprep.subr.bf16.mxu0 %v1548
    %2151 = vmatpush1.bf16.msra.mxu0 %v1547
    %2152 = vmatprep.subr.bf16.mxu0 %v1552
    %2153 = vmatpush1.bf16.msra.mxu0 %v1551
    %2154 = vmatprep.subr.bf16.mxu0 %v1556
    %2155 = vmatpush1.bf16.msra.mxu0 %v1555
    %2156 = vmatprep.subr.bf16.mxu0 %v1560
    %2157 = vmatpush1.bf16.msra.mxu0 %v1559
    %2158 = vmatprep.subr.bf16.mxu0 %v1564
    %2159 = vmatpush1.bf16.msra.mxu0 %v1563
    %2160 = vmatprep.subr.bf16.mxu0 %v1568
    %2161 = vmatpush1.bf16.msra.mxu0 %v1567
    %2162 = vmatprep.subr.bf16.mxu0 %v1572
    %2163 = vmatpush1.bf16.msra.mxu0 %v1571
    %2164 = vmatprep.subr.bf16.mxu0 %v1576
    %2165 = vmatpush1.bf16.msra.mxu0 %v1575
    %2166 = vmatprep.mubr.bf16.mxu0 %v474
    %2167 = vmatmul.mubr.bf16.gmra.mrb[0].mxu0 %v473
    %v2168 = vpop.f32.mrb[0].mxu0
    %v2169 = vadd.f32 %v2126, %v2168
    %v2170 = vpop.f32.mrb[0].mxu0
    %v2171 = vadd.f32 %v2128, %v2170
    %v2172 = vpop.f32.mrb[0].mxu0
    %v2173 = vadd.f32 %v2130, %v2172
    %v2174 = vpop.f32.mrb[0].mxu0
    %v2175 = vadd.f32 %v2132, %v2174
    %2176 = vdwg.mxu0
    %2177 = vmatprep.subr.bf16.mxu0 %v1580
    %2178 = vmatpush1.bf16.msra.mxu0 %v1579
    %2179 = vmatprep.subr.bf16.mxu0 %v1584
    %2180 = vmatpush1.bf16.msra.mxu0 %v1583
    %2181 = vmatprep.subr.bf16.mxu0 %v1588
    %2182 = vmatpush1.bf16.msra.mxu0 %v1587
    %2183 = vmatprep.subr.bf16.mxu0 %v1592
    %2184 = vmatpush1.bf16.msra.mxu0 %v1591
    %2185 = vmatprep.subr.bf16.mxu0 %v1596
    %2186 = vmatpush1.bf16.msra.mxu0 %v1595
    %2187 = vmatprep.subr.bf16.mxu0 %v1600
    %2188 = vmatpush1.bf16.msra.mxu0 %v1599
    %2189 = vmatprep.subr.bf16.mxu0 %v1604
    %2190 = vmatpush1.bf16.msra.mxu0 %v1603
    %2191 = vmatprep.subr.bf16.mxu0 %v1608
    %2192 = vmatpush1.bf16.msra.mxu0 %v1607
    %2193 = vmatprep.subr.bf16.mxu0 %v1612
    %2194 = vmatpush1.bf16.msra.mxu0 %v1611
    %2195 = vmatprep.subr.bf16.mxu0 %v1616
    %2196 = vmatpush1.bf16.msra.mxu0 %v1615
    %2197 = vmatprep.subr.bf16.mxu0 %v1620
    %2198 = vmatpush1.bf16.msra.mxu0 %v1619
    %2199 = vmatprep.subr.bf16.mxu0 %v1624
    %2200 = vmatpush1.bf16.msra.mxu0 %v1623
    %2201 = vmatprep.subr.bf16.mxu0 %v1628
    %2202 = vmatpush1.bf16.msra.mxu0 %v1627
    %2203 = vmatprep.subr.bf16.mxu0 %v1632
    %2204 = vmatpush1.bf16.msra.mxu0 %v1631
    %2205 = vmatprep.subr.bf16.mxu0 %v1636
    %2206 = vmatpush1.bf16.msra.mxu0 %v1635
    %2207 = vmatprep.subr.bf16.mxu0 %v1640
    %2208 = vmatpush1.bf16.msra.mxu0 %v1639
    %2209 = vmatprep.mubr.bf16.mxu0 %v476
    %2210 = vmatmul.mubr.bf16.gmra.mrb[0].mxu0 %v475
    %v2211 = vpop.f32.mrb[0].mxu0
    %v2212 = vadd.f32 %v2169, %v2211
    %v2213 = vpop.f32.mrb[0].mxu0
    %v2214 = vadd.f32 %v2171, %v2213
    %v2215 = vpop.f32.mrb[0].mxu0
    %v2216 = vadd.f32 %v2173, %v2215
    %v2217 = vpop.f32.mrb[0].mxu0
    %v2218 = vadd.f32 %v2175, %v2217
    %2219 = vdwg.mxu0
    %2220 = vmatprep.subr.bf16.mxu0 %v1644
    %2221 = vmatpush1.bf16.msra.mxu0 %v1643
    %2222 = vmatprep.subr.bf16.mxu0 %v1648
    %2223 = vmatpush1.bf16.msra.mxu0 %v1647
    %2224 = vmatprep.subr.bf16.mxu0 %v1652
    %2225 = vmatpush1.bf16.msra.mxu0 %v1651
    %2226 = vmatprep.subr.bf16.mxu0 %v1656
    %2227 = vmatpush1.bf16.msra.mxu0 %v1655
    %2228 = vmatprep.subr.bf16.mxu0 %v1660
    %2229 = vmatpush1.bf16.msra.mxu0 %v1659
    %2230 = vmatprep.subr.bf16.mxu0 %v1664
    %2231 = vmatpush1.bf16.msra.mxu0 %v1663
    %2232 = vmatprep.subr.bf16.mxu0 %v1668
    %2233 = vmatpush1.bf16.msra.mxu0 %v1667
    %2234 = vmatprep.subr.bf16.mxu0 %v1672
    %2235 = vmatpush1.bf16.msra.mxu0 %v1671
    %2236 = vmatprep.subr.bf16.mxu0 %v1676
    %2237 = vmatpush1.bf16.msra.mxu0 %v1675
    %2238 = vmatprep.subr.bf16.mxu0 %v1680
    %2239 = vmatpush1.bf16.msra.mxu0 %v1679
    %2240 = vmatprep.subr.bf16.mxu0 %v1684
    %2241 = vmatpush1.bf16.msra.mxu0 %v1683
    %2242 = vmatprep.subr.bf16.mxu0 %v1688
    %2243 = vmatpush1.bf16.msra.mxu0 %v1687
    %2244 = vmatprep.subr.bf16.mxu0 %v1692
    %2245 = vmatpush1.bf16.msra.mxu0 %v1691
    %2246 = vmatprep.subr.bf16.mxu0 %v1696
    %2247 = vmatpush1.bf16.msra.mxu0 %v1695
    %2248 = vmatprep.subr.bf16.mxu0 %v1700
    %2249 = vmatpush1.bf16.msra.mxu0 %v1699
    %2250 = vmatprep.subr.bf16.mxu0 %v1704
    %2251 = vmatpush1.bf16.msra.mxu0 %v1703
    %2252 = vmatprep.mubr.bf16.mxu0 %v478
    %2253 = vmatmul.mubr.bf16.gmra.mrb[0].mxu0 %v477
    %v2254 = vpop.f32.mrb[0].mxu0
    %v2255 = vadd.f32 %v2212, %v2254
    %v2256 = vpop.f32.mrb[0].mxu0
    %v2257 = vadd.f32 %v2214, %v2256
    %v2258 = vpop.f32.mrb[0].mxu0
    %v2259 = vadd.f32 %v2216, %v2258
    %v2260 = vpop.f32.mrb[0].mxu0
    %v2261 = vadd.f32 %v2218, %v2260
    %2262 = vdwg.mxu0
    %2263 = vmatprep.subr.bf16.mxu0 %v1708
    %2264 = vmatpush1.bf16.msra.mxu0 %v1707
    %2265 = vmatprep.subr.bf16.mxu0 %v1712
    %2266 = vmatpush1.bf16.msra.mxu0 %v1711
    %2267 = vmatprep.subr.bf16.mxu0 %v1716
    %2268 = vmatpush1.bf16.msra.mxu0 %v1715
    %2269 = vmatprep.subr.bf16.mxu0 %v1720
    %2270 = vmatpush1.bf16.msra.mxu0 %v1719
    %2271 = vmatprep.subr.bf16.mxu0 %v1724
    %2272 = vmatpush1.bf16.msra.mxu0 %v1723
    %2273 = vmatprep.subr.bf16.mxu0 %v1728
    %2274 = vmatpush1.bf16.msra.mxu0 %v1727
    %2275 = vmatprep.subr.bf16.mxu0 %v1732
    %2276 = vmatpush1.bf16.msra.mxu0 %v1731
    %2277 = vmatprep.subr.bf16.mxu0 %v1736
    %2278 = vmatpush1.bf16.msra.mxu0 %v1735
    %2279 = vmatprep.subr.bf16.mxu0 %v1740
    %2280 = vmatpush1.bf16.msra.mxu0 %v1739
    %2281 = vmatprep.subr.bf16.mxu0 %v1744
    %2282 = vmatpush1.bf16.msra.mxu0 %v1743
    %2283 = vmatprep.subr.bf16.mxu0 %v1748
    %2284 = vmatpush1.bf16.msra.mxu0 %v1747
    %2285 = vmatprep.subr.bf16.mxu0 %v1752
    %2286 = vmatpush1.bf16.msra.mxu0 %v1751
    %2287 = vmatprep.subr.bf16.mxu0 %v1756
    %2288 = vmatpush1.bf16.msra.mxu0 %v1755
    %2289 = vmatprep.subr.bf16.mxu0 %v1760
    %2290 = vmatpush1.bf16.msra.mxu0 %v1759
    %2291 = vmatprep.subr.bf16.mxu0 %v1764
    %2292 = vmatpush1.bf16.msra.mxu0 %v1763
    %2293 = vmatprep.subr.bf16.mxu0 %v1768
    %2294 = vmatpush1.bf16.msra.mxu0 %v1767
    %2295 = vmatprep.mubr.bf16.mxu0 %v480
    %2296 = vmatmul.mubr.bf16.gmra.mrb[0].mxu0 %v479
    %v2297 = vpop.f32.mrb[0].mxu0
    %v2298 = vadd.f32 %v2255, %v2297
    %v2299 = vpop.f32.mrb[0].mxu0
    %v2300 = vadd.f32 %v2257, %v2299
    %v2301 = vpop.f32.mrb[0].mxu0
    %v2302 = vadd.f32 %v2259, %v2301
    %v2303 = vpop.f32.mrb[0].mxu0
    %v2304 = vadd.f32 %v2261, %v2303
    %2305 = vdwg.mxu0
    %2306 = vmatprep.subr.bf16.mxu0 %v1454
    %2307 = vmatpush1.bf16.msra.mxu0 %v1453
    %2308 = vmatprep.subr.bf16.mxu0 %v1458
    %2309 = vmatpush1.bf16.msra.mxu0 %v1457
    %2310 = vmatprep.subr.bf16.mxu0 %v1462
    %2311 = vmatpush1.bf16.msra.mxu0 %v1461
    %2312 = vmatprep.subr.bf16.mxu0 %v1466
    %2313 = vmatpush1.bf16.msra.mxu0 %v1465
    %2314 = vmatprep.subr.bf16.mxu0 %v1470
    %2315 = vmatpush1.bf16.msra.mxu0 %v1469
    %2316 = vmatprep.subr.bf16.mxu0 %v1474
    %2317 = vmatpush1.bf16.msra.mxu0 %v1473
    %2318 = vmatprep.subr.bf16.mxu0 %v1478
    %2319 = vmatpush1.bf16.msra.mxu0 %v1477
    %2320 = vmatprep.subr.bf16.mxu0 %v1482
    %2321 = vmatpush1.bf16.msra.mxu0 %v1481
    %2322 = vmatprep.subr.bf16.mxu0 %v1486
    %2323 = vmatpush1.bf16.msra.mxu0 %v1485
    %2324 = vmatprep.subr.bf16.mxu0 %v1490
    %2325 = vmatpush1.bf16.msra.mxu0 %v1489
    %2326 = vmatprep.subr.bf16.mxu0 %v1494
    %2327 = vmatpush1.bf16.msra.mxu0 %v1493
    %2328 = vmatprep.subr.bf16.mxu0 %v1498
    %2329 = vmatpush1.bf16.msra.mxu0 %v1497
    %2330 = vmatprep.subr.bf16.mxu0 %v1502
    %2331 = vmatpush1.bf16.msra.mxu0 %v1501
    %2332 = vmatprep.subr.bf16.mxu0 %v1506
    %2333 = vmatpush1.bf16.msra.mxu0 %v1505
    %2334 = vmatprep.subr.bf16.mxu0 %v1510
    %2335 = vmatpush1.bf16.msra.mxu0 %v1509
    %2336 = vmatprep.subr.bf16.mxu0 %v1514
    %2337 = vmatpush1.bf16.msra.mxu0 %v1513
    %2338 = vmatprep.mubr.bf16.mxu0 %v472
    %2339 = vmatmul.mubr.bf16.gmra.mrb[0].mxu0 %v471
    %v2340 = vpop.f32.mrb[0].mxu0
    %v2341 = vadd.f32 %v432, %v2340
    %v2342 = vpop.f32.mrb[0].mxu0
    %v2343 = vadd.f32 %v436, %v2342
    %v2344 = vpop.f32.mrb[0].mxu0
    %v2345 = vadd.f32 %v432, %v2344
    %v2346 = vpop.f32.mrb[0].mxu0
    %v2347 = vadd.f32 %v436, %v2346
    %2348 = vdwg.mxu0
    %2349 = vmatprep.subr.bf16.mxu0 %v1518
    %2350 = vmatpush1.bf16.msra.mxu0 %v1517
    %2351 = vmatprep.subr.bf16.mxu0 %v1522
    %2352 = vmatpush1.bf16.msra.mxu0 %v1521
    %2353 = vmatprep.subr.bf16.mxu0 %v1526
    %2354 = vmatpush1.bf16.msra.mxu0 %v1525
    %2355 = vmatprep.subr.bf16.mxu0 %v1530
    %2356 = vmatpush1.bf16.msra.mxu0 %v1529
    %2357 = vmatprep.subr.bf16.mxu0 %v1534
    %2358 = vmatpush1.bf16.msra.mxu0 %v1533
    %2359 = vmatprep.subr.bf16.mxu0 %v1538
    %2360 = vmatpush1.bf16.msra.mxu0 %v1537
    %2361 = vmatprep.subr.bf16.mxu0 %v1542
    %2362 = vmatpush1.bf16.msra.mxu0 %v1541
    %2363 = vmatprep.subr.bf16.mxu0 %v1546
    %2364 = vmatpush1.bf16.msra.mxu0 %v1545
    %2365 = vmatprep.subr.bf16.mxu0 %v1550
    %2366 = vmatpush1.bf16.msra.mxu0 %v1549
    %2367 = vmatprep.subr.bf16.mxu0 %v1554
    %2368 = vmatpush1.bf16.msra.mxu0 %v1553
    %2369 = vmatprep.subr.bf16.mxu0 %v1558
    %2370 = vmatpush1.bf16.msra.mxu0 %v1557
    %2371 = vmatprep.subr.bf16.mxu0 %v1562
    %2372 = vmatpush1.bf16.msra.mxu0 %v1561
    %2373 = vmatprep.subr.bf16.mxu0 %v1566
    %2374 = vmatpush1.bf16.msra.mxu0 %v1565
    %2375 = vmatprep.subr.bf16.mxu0 %v1570
    %2376 = vmatpush1.bf16.msra.mxu0 %v1569
    %2377 = vmatprep.subr.bf16.mxu0 %v1574
    %2378 = vmatpush1.bf16.msra.mxu0 %v1573
    %2379 = vmatprep.subr.bf16.mxu0 %v1578
    %2380 = vmatpush1.bf16.msra.mxu0 %v1577
    %2381 = vmatprep.mubr.bf16.mxu0 %v474
    %2382 = vmatmul.mubr.bf16.gmra.mrb[0].mxu0 %v473
    %v2383 = vpop.f32.mrb[0].mxu0
    %v2384 = vadd.f32 %v2341, %v2383
    %v2385 = vpop.f32.mrb[0].mxu0
    %v2386 = vadd.f32 %v2343, %v2385
    %v2387 = vpop.f32.mrb[0].mxu0
    %v2388 = vadd.f32 %v2345, %v2387
    %v2389 = vpop.f32.mrb[0].mxu0
    %v2390 = vadd.f32 %v2347, %v2389
    %2391 = vdwg.mxu0
    %2392 = vmatprep.subr.bf16.mxu0 %v1582
    %2393 = vmatpush1.bf16.msra.mxu0 %v1581
    %2394 = vmatprep.subr.bf16.mxu0 %v1586
    %2395 = vmatpush1.bf16.msra.mxu0 %v1585
    %2396 = vmatprep.subr.bf16.mxu0 %v1590
    %2397 = vmatpush1.bf16.msra.mxu0 %v1589
    %2398 = vmatprep.subr.bf16.mxu0 %v1594
    %2399 = vmatpush1.bf16.msra.mxu0 %v1593
    %2400 = vmatprep.subr.bf16.mxu0 %v1598
    %2401 = vmatpush1.bf16.msra.mxu0 %v1597
    %2402 = vmatprep.subr.bf16.mxu0 %v1602
    %2403 = vmatpush1.bf16.msra.mxu0 %v1601
    %2404 = vmatprep.subr.bf16.mxu0 %v1606
    %2405 = vmatpush1.bf16.msra.mxu0 %v1605
    %2406 = vmatprep.subr.bf16.mxu0 %v1610
    %2407 = vmatpush1.bf16.msra.mxu0 %v1609
    %2408 = vmatprep.subr.bf16.mxu0 %v1614
    %2409 = vmatpush1.bf16.msra.mxu0 %v1613
    %2410 = vmatprep.subr.bf16.mxu0 %v1618
    %2411 = vmatpush1.bf16.msra.mxu0 %v1617
    %2412 = vmatprep.subr.bf16.mxu0 %v1622
    %2413 = vmatpush1.bf16.msra.mxu0 %v1621
    %2414 = vmatprep.subr.bf16.mxu0 %v1626
    %2415 = vmatpush1.bf16.msra.mxu0 %v1625
    %2416 = vmatprep.subr.bf16.mxu0 %v1630
    %2417 = vmatpush1.bf16.msra.mxu0 %v1629
    %2418 = vmatprep.subr.bf16.mxu0 %v1634
    %2419 = vmatpush1.bf16.msra.mxu0 %v1633
    %2420 = vmatprep.subr.bf16.mxu0 %v1638
    %2421 = vmatpush1.bf16.msra.mxu0 %v1637
    %2422 = vmatprep.subr.bf16.mxu0 %v1642
    %2423 = vmatpush1.bf16.msra.mxu0 %v1641
    %2424 = vmatprep.mubr.bf16.mxu0 %v476
    %2425 = vmatmul.mubr.bf16.gmra.mrb[0].mxu0 %v475
    %v2426 = vpop.f32.mrb[0].mxu0
    %v2427 = vadd.f32 %v2384, %v2426
    %v2428 = vpop.f32.mrb[0].mxu0
    %v2429 = vadd.f32 %v2386, %v2428
    %v2430 = vpop.f32.mrb[0].mxu0
    %v2431 = vadd.f32 %v2388, %v2430
    %v2432 = vpop.f32.mrb[0].mxu0
    %v2433 = vadd.f32 %v2390, %v2432
    %2434 = vdwg.mxu0
    %2435 = vmatprep.subr.bf16.mxu0 %v1646
    %2436 = vmatpush1.bf16.msra.mxu0 %v1645
    %2437 = vmatprep.subr.bf16.mxu0 %v1650
    %2438 = vmatpush1.bf16.msra.mxu0 %v1649
    %2439 = vmatprep.subr.bf16.mxu0 %v1654
    %2440 = vmatpush1.bf16.msra.mxu0 %v1653
    %2441 = vmatprep.subr.bf16.mxu0 %v1658
    %2442 = vmatpush1.bf16.msra.mxu0 %v1657
    %2443 = vmatprep.subr.bf16.mxu0 %v1662
    %2444 = vmatpush1.bf16.msra.mxu0 %v1661
    %2445 = vmatprep.subr.bf16.mxu0 %v1666
    %2446 = vmatpush1.bf16.msra.mxu0 %v1665
    %2447 = vmatprep.subr.bf16.mxu0 %v1670
    %2448 = vmatpush1.bf16.msra.mxu0 %v1669
    %2449 = vmatprep.subr.bf16.mxu0 %v1674
    %2450 = vmatpush1.bf16.msra.mxu0 %v1673
    %2451 = vmatprep.subr.bf16.mxu0 %v1678
    %2452 = vmatpush1.bf16.msra.mxu0 %v1677
    %2453 = vmatprep.subr.bf16.mxu0 %v1682
    %2454 = vmatpush1.bf16.msra.mxu0 %v1681
    %2455 = vmatprep.subr.bf16.mxu0 %v1686
    %2456 = vmatpush1.bf16.msra.mxu0 %v1685
    %2457 = vmatprep.subr.bf16.mxu0 %v1690
    %2458 = vmatpush1.bf16.msra.mxu0 %v1689
    %2459 = vmatprep.subr.bf16.mxu0 %v1694
    %2460 = vmatpush1.bf16.msra.mxu0 %v1693
    %2461 = vmatprep.subr.bf16.mxu0 %v1698
    %2462 = vmatpush1.bf16.msra.mxu0 %v1697
    %2463 = vmatprep.subr.bf16.mxu0 %v1702
    %2464 = vmatpush1.bf16.msra.mxu0 %v1701
    %2465 = vmatprep.subr.bf16.mxu0 %v1706
    %2466 = vmatpush1.bf16.msra.mxu0 %v1705
    %2467 = vmatprep.mubr.bf16.mxu0 %v478
    %2468 = vmatmul.mubr.bf16.gmra.mrb[0].mxu0 %v477
    %v2469 = vpop.f32.mrb[0].mxu0
    %v2470 = vadd.f32 %v2427, %v2469
    %v2471 = vpop.f32.mrb[0].mxu0
    %v2472 = vadd.f32 %v2429, %v2471
    %v2473 = vpop.f32.mrb[0].mxu0
    %v2474 = vadd.f32 %v2431, %v2473
    %v2475 = vpop.f32.mrb[0].mxu0
    %v2476 = vadd.f32 %v2433, %v2475
    %2477 = vdwg.mxu0
    %2478 = vmatprep.subr.bf16.mxu0 %v1710
    %2479 = vmatpush1.bf16.msra.mxu0 %v1709
    %2480 = vmatprep.subr.bf16.mxu0 %v1714
    %2481 = vmatpush1.bf16.msra.mxu0 %v1713
    %2482 = vmatprep.subr.bf16.mxu0 %v1718
    %2483 = vmatpush1.bf16.msra.mxu0 %v1717
    %2484 = vmatprep.subr.bf16.mxu0 %v1722
    %2485 = vmatpush1.bf16.msra.mxu0 %v1721
    %2486 = vmatprep.subr.bf16.mxu0 %v1726
    %2487 = vmatpush1.bf16.msra.mxu0 %v1725
    %2488 = vmatprep.subr.bf16.mxu0 %v1730
    %2489 = vmatpush1.bf16.msra.mxu0 %v1729
    %2490 = vmatprep.subr.bf16.mxu0 %v1734
    %2491 = vmatpush1.bf16.msra.mxu0 %v1733
    %2492 = vmatprep.subr.bf16.mxu0 %v1738
    %2493 = vmatpush1.bf16.msra.mxu0 %v1737
    %2494 = vmatprep.subr.bf16.mxu0 %v1742
    %2495 = vmatpush1.bf16.msra.mxu0 %v1741
    %2496 = vmatprep.subr.bf16.mxu0 %v1746
    %2497 = vmatpush1.bf16.msra.mxu0 %v1745
    %2498 = vmatprep.subr.bf16.mxu0 %v1750
    %2499 = vmatpush1.bf16.msra.mxu0 %v1749
    %2500 = vmatprep.subr.bf16.mxu0 %v1754
    %2501 = vmatpush1.bf16.msra.mxu0 %v1753
    %2502 = vmatprep.subr.bf16.mxu0 %v1758
    %2503 = vmatpush1.bf16.msra.mxu0 %v1757
    %2504 = vmatprep.subr.bf16.mxu0 %v1762
    %2505 = vmatpush1.bf16.msra.mxu0 %v1761
    %2506 = vmatprep.subr.bf16.mxu0 %v1766
    %2507 = vmatpush1.bf16.msra.mxu0 %v1765
    %2508 = vmatprep.subr.bf16.mxu0 %v1770
    %2509 = vmatpush1.bf16.msra.mxu0 %v1769
    %2510 = vmatprep.mubr.bf16.mxu0 %v480
    %2511 = vmatmul.mubr.bf16.gmra.mrb[0].mxu0 %v479
    %v2512 = vpop.f32.mrb[0].mxu0
    %v2513 = vadd.f32 %v2470, %v2512
    %v2514 = vpop.f32.mrb[0].mxu0
    %v2515 = vadd.f32 %v2472, %v2514
    %v2516 = vpop.f32.mrb[0].mxu0
    %v2517 = vadd.f32 %v2474, %v2516
    %v2518 = vpop.f32.mrb[0].mxu0
    %v2519 = vadd.f32 %v2476, %v2518
    %2520 = vdwg.mxu0
    %v2521 = vmax.f32 %v2298, 0.0
    %v2522 = vmax.f32 %v2300, 0.0
    %v2523 = vmax.f32 %v2513, 0.0
    %v2524 = vmax.f32 %v2515, 0.0
    %v2525 = vmax.f32 %v2302, 0.0
    %v2526 = vmax.f32 %v2304, 0.0
    %v2527 = vmax.f32 %v2517, 0.0
    %v2528 = vmax.f32 %v2519, 0.0
    %v2529 = vpack.c.bf16 %v2525, %v2521
    %v2530 = vpack.c.bf16 %v2526, %v2522
    %v2531 = vpack.c.bf16 %v2527, %v2523
    %v2532 = vpack.c.bf16 %v2528, %v2524
    %v2533 = vld [vmem:[#allocation6] sm:$0xf]
    %v2534 = vld [vmem:[#allocation6 + $0x4] sm:$0xf]
    %v2535 = vld [vmem:[#allocation6 + $0x8] sm:$0xf]
    %v2536 = vld [vmem:[#allocation6 + $0xc] sm:$0xf]
    %v2537 = vld [vmem:[#allocation6 + $0x10] sm:$0xf]
    %v2538 = vld [vmem:[#allocation6 + $0x14] sm:$0xf]
    %v2539 = vld [vmem:[#allocation6 + $0x18] sm:$0xf]
    %v2540 = vld [vmem:[#allocation6 + $0x1c] sm:$0xf]
    %v2541 = vld [vmem:[#allocation6 + $0x20] sm:$0xf]
    %v2542 = vld [vmem:[#allocation6 + $0x24] sm:$0xf]
    %v2543 = vld [vmem:[#allocation6 + $0x28] sm:$0xf]
    %v2544 = vld [vmem:[#allocation6 + $0x2c] sm:$0xf]
    %v2545 = vld [vmem:[#allocation6 + $0x30] sm:$0xf]
    %v2546 = vld [vmem:[#allocation6 + $0x34] sm:$0xf]
    %v2547 = vld [vmem:[#allocation6 + $0x38] sm:$0xf]
    %v2548 = vld [vmem:[#allocation6 + $0x3c] sm:$0xf]
    %v2549 = vld [vmem:[#allocation6 + $0x40] sm:$0xf]
    %v2550 = vld [vmem:[#allocation6 + $0x44] sm:$0xf]
    %v2551 = vld [vmem:[#allocation6 + $0x48] sm:$0xf]
    %v2552 = vld [vmem:[#allocation6 + $0x4c] sm:$0xf]
    %v2553 = vld [vmem:[#allocation6 + $0x50] sm:$0xf]
    %v2554 = vld [vmem:[#allocation6 + $0x54] sm:$0xf]
    %v2555 = vld [vmem:[#allocation6 + $0x58] sm:$0xf]
    %v2556 = vld [vmem:[#allocation6 + $0x5c] sm:$0xf]
    %v2557 = vld [vmem:[#allocation6 + $0x60] sm:$0xf]
    %v2558 = vld [vmem:[#allocation6 + $0x64] sm:$0xf]
    %v2559 = vld [vmem:[#allocation6 + $0x68] sm:$0xf]
    %v2560 = vld [vmem:[#allocation6 + $0x6c] sm:$0xf]
    %v2561 = vld [vmem:[#allocation6 + $0x70] sm:$0xf]
    %v2562 = vld [vmem:[#allocation6 + $0x74] sm:$0xf]
    %v2563 = vld [vmem:[#allocation6 + $0x78] sm:$0xf]
    %v2564 = vld [vmem:[#allocation6 + $0x7c] sm:$0xf]
    %v2565 = vld [vmem:[#allocation6 + $0x80] sm:$0xf]
    %v2566 = vld [vmem:[#allocation6 + $0x84] sm:$0xf]
    %v2567 = vld [vmem:[#allocation6 + $0x88] sm:$0xf]
    %v2568 = vld [vmem:[#allocation6 + $0x8c] sm:$0xf]
    %v2569 = vld [vmem:[#allocation6 + $0x90] sm:$0xf]
    %v2570 = vld [vmem:[#allocation6 + $0x94] sm:$0xf]
    %v2571 = vld [vmem:[#allocation6 + $0x98] sm:$0xf]
    %v2572 = vld [vmem:[#allocation6 + $0x9c] sm:$0xf]
    %v2573 = vld [vmem:[#allocation6 + $0xa0] sm:$0xf]
    %v2574 = vld [vmem:[#allocation6 + $0xa4] sm:$0xf]
    %v2575 = vld [vmem:[#allocation6 + $0xa8] sm:$0xf]
    %v2576 = vld [vmem:[#allocation6 + $0xac] sm:$0xf]
    %v2577 = vld [vmem:[#allocation6 + $0xb0] sm:$0xf]
    %v2578 = vld [vmem:[#allocation6 + $0xb4] sm:$0xf]
    %v2579 = vld [vmem:[#allocation6 + $0xb8] sm:$0xf]
    %v2580 = vld [vmem:[#allocation6 + $0xbc] sm:$0xf]
    %v2581 = vld [vmem:[#allocation6 + $0xc0] sm:$0xf]
    %v2582 = vld [vmem:[#allocation6 + $0xc4] sm:$0xf]
    %v2583 = vld [vmem:[#allocation6 + $0xc8] sm:$0xf]
    %v2584 = vld [vmem:[#allocation6 + $0xcc] sm:$0xf]
    %v2585 = vld [vmem:[#allocation6 + $0xd0] sm:$0xf]
    %v2586 = vld [vmem:[#allocation6 + $0xd4] sm:$0xf]
    %v2587 = vld [vmem:[#allocation6 + $0xd8] sm:$0xf]
    %v2588 = vld [vmem:[#allocation6 + $0xdc] sm:$0xf]
    %v2589 = vld [vmem:[#allocation6 + $0xe0] sm:$0xf]
    %v2590 = vld [vmem:[#allocation6 + $0xe4] sm:$0xf]
    %v2591 = vld [vmem:[#allocation6 + $0xe8] sm:$0xf]
    %v2592 = vld [vmem:[#allocation6 + $0xec] sm:$0xf]
    %v2593 = vld [vmem:[#allocation6 + $0xf0] sm:$0xf]
    %v2594 = vld [vmem:[#allocation6 + $0xf4] sm:$0xf]
    %v2595 = vld [vmem:[#allocation6 + $0xf8] sm:$0xf]
    %v2596 = vld [vmem:[#allocation6 + $0xfc] sm:$0xf]
    %v2597 = vld [vmem:[#allocation7] sm:$0x1]
    %v2599 = vlaneseq
    %v2600 = vshrl.u32 %v2599, 7
    %v2601 = vsub.s32 0, %v2600
    %v2602 = vrot.slane %v2597, %v2601
    %v2668 = vunpack.c.l.b16 %v2533
    %v2669 = vunpack.c.l.b16 %v2534
    %v2670 = vunpack.c.l.b16 %v2535
    %v2671 = vunpack.c.l.b16 %v2536
    %v2672 = vunpack.c.l.b16 %v2537
    %v2673 = vunpack.c.l.b16 %v2538
    %v2674 = vunpack.c.l.b16 %v2539
    %v2675 = vunpack.c.l.b16 %v2540
    %v2676 = vunpack.c.l.b16 %v2541
    %v2677 = vunpack.c.l.b16 %v2542
    %v2678 = vunpack.c.l.b16 %v2543
    %v2679 = vunpack.c.l.b16 %v2544
    %v2680 = vunpack.c.l.b16 %v2545
    %v2681 = vunpack.c.l.b16 %v2546
    %v2682 = vunpack.c.l.b16 %v2547
    %v2683 = vunpack.c.l.b16 %v2548
    %v2684 = vunpack.c.l.b16 %v2549
    %v2685 = vunpack.c.l.b16 %v2550
    %v2686 = vunpack.c.l.b16 %v2551
    %v2687 = vunpack.c.l.b16 %v2552
    %v2688 = vunpack.c.l.b16 %v2553
    %v2689 = vunpack.c.l.b16 %v2554
    %v2690 = vunpack.c.l.b16 %v2555
    %v2691 = vunpack.c.l.b16 %v2556
    %v2692 = vunpack.c.l.b16 %v2557
    %v2693 = vunpack.c.l.b16 %v2558
    %v2694 = vunpack.c.l.b16 %v2559
    %v2695 = vunpack.c.l.b16 %v2560
    %v2696 = vunpack.c.l.b16 %v2561
    %v2697 = vunpack.c.l.b16 %v2562
    %v2698 = vunpack.c.l.b16 %v2563
    %v2699 = vunpack.c.l.b16 %v2564
    %v2700 = vunpack.c.l.b16 %v2565
    %v2701 = vunpack.c.l.b16 %v2566
    %v2702 = vunpack.c.l.b16 %v2567
    %v2703 = vunpack.c.l.b16 %v2568
    %v2704 = vunpack.c.l.b16 %v2569
    %v2705 = vunpack.c.l.b16 %v2570
    %v2706 = vunpack.c.l.b16 %v2571
    %v2707 = vunpack.c.l.b16 %v2572
    %v2708 = vunpack.c.l.b16 %v2573
    %v2709 = vunpack.c.l.b16 %v2574
    %v2710 = vunpack.c.l.b16 %v2575
    %v2711 = vunpack.c.l.b16 %v2576
    %v2712 = vunpack.c.l.b16 %v2577
    %v2713 = vunpack.c.l.b16 %v2578
    %v2714 = vunpack.c.l.b16 %v2579
    %v2715 = vunpack.c.l.b16 %v2580
    %v2716 = vunpack.c.l.b16 %v2581
    %v2717 = vunpack.c.l.b16 %v2582
    %v2718 = vunpack.c.l.b16 %v2583
    %v2719 = vunpack.c.l.b16 %v2584
    %v2720 = vunpack.c.l.b16 %v2585
    %v2721 = vunpack.c.l.b16 %v2586
    %v2722 = vunpack.c.l.b16 %v2587
    %v2723 = vunpack.c.l.b16 %v2588
    %v2724 = vunpack.c.l.b16 %v2589
    %v2725 = vunpack.c.l.b16 %v2590
    %v2726 = vunpack.c.l.b16 %v2591
    %v2727 = vunpack.c.l.b16 %v2592
    %v2728 = vunpack.c.l.b16 %v2593
    %v2729 = vunpack.c.l.b16 %v2594
    %v2730 = vunpack.c.l.b16 %v2595
    %v2731 = vunpack.c.l.b16 %v2596
    %v2732 = vpack.c.b16 %v2669, %v2668
    %v2733 = vpack.c.b16 %v2671, %v2670
    %v2734 = vpack.c.b16 %v2673, %v2672
    %v2735 = vpack.c.b16 %v2675, %v2674
    %v2736 = vpack.c.b16 %v2677, %v2676
    %v2737 = vpack.c.b16 %v2679, %v2678
    %v2738 = vpack.c.b16 %v2681, %v2680
    %v2739 = vpack.c.b16 %v2683, %v2682
    %v2740 = vpack.c.b16 %v2685, %v2684
    %v2741 = vpack.c.b16 %v2687, %v2686
    %v2742 = vpack.c.b16 %v2689, %v2688
    %v2743 = vpack.c.b16 %v2691, %v2690
    %v2744 = vpack.c.b16 %v2693, %v2692
    %v2745 = vpack.c.b16 %v2695, %v2694
    %v2746 = vpack.c.b16 %v2697, %v2696
    %v2747 = vpack.c.b16 %v2699, %v2698
    %v2748 = vpack.c.b16 %v2701, %v2700
    %v2749 = vpack.c.b16 %v2703, %v2702
    %v2750 = vpack.c.b16 %v2705, %v2704
    %v2751 = vpack.c.b16 %v2707, %v2706
    %v2752 = vpack.c.b16 %v2709, %v2708
    %v2753 = vpack.c.b16 %v2711, %v2710
    %v2754 = vpack.c.b16 %v2713, %v2712
    %v2755 = vpack.c.b16 %v2715, %v2714
    %v2756 = vpack.c.b16 %v2717, %v2716
    %v2757 = vpack.c.b16 %v2719, %v2718
    %v2758 = vpack.c.b16 %v2721, %v2720
    %v2759 = vpack.c.b16 %v2723, %v2722
    %v2760 = vpack.c.b16 %v2725, %v2724
    %v2761 = vpack.c.b16 %v2727, %v2726
    %v2762 = vpack.c.b16 %v2729, %v2728
    %v2763 = vpack.c.b16 %v2731, %v2730
    %2796 = vmatprep.subr.bf16.mxu0 0
    %2797 = vmatpush1.bf16.msra.mxu0 %v2732
    %2798 = vmatprep.subr.bf16.mxu0 0
    %2799 = vmatpush1.bf16.msra.mxu0 %v2733
    %2800 = vmatprep.subr.bf16.mxu0 0
    %2801 = vmatpush1.bf16.msra.mxu0 %v2734
    %2802 = vmatprep.subr.bf16.mxu0 0
    %2803 = vmatpush1.bf16.msra.mxu0 %v2735
    %2804 = vmatprep.subr.bf16.mxu0 0
    %2805 = vmatpush1.bf16.msra.mxu0 %v2736
    %2806 = vmatprep.subr.bf16.mxu0 0
    %2807 = vmatpush1.bf16.msra.mxu0 %v2737
    %2808 = vmatprep.subr.bf16.mxu0 0
    %2809 = vmatpush1.bf16.msra.mxu0 %v2738
    %2810 = vmatprep.subr.bf16.mxu0 0
    %2811 = vmatpush1.bf16.msra.mxu0 %v2739
    %2812 = vmatprep.subr.bf16.mxu0 0
    %2813 = vmatpush1.bf16.msra.mxu0 %v2740
    %2814 = vmatprep.subr.bf16.mxu0 0
    %2815 = vmatpush1.bf16.msra.mxu0 %v2741
    %2816 = vmatprep.subr.bf16.mxu0 0
    %2817 = vmatpush1.bf16.msra.mxu0 %v2742
    %2818 = vmatprep.subr.bf16.mxu0 0
    %2819 = vmatpush1.bf16.msra.mxu0 %v2743
    %2820 = vmatprep.subr.bf16.mxu0 0
    %2821 = vmatpush1.bf16.msra.mxu0 %v2744
    %2822 = vmatprep.subr.bf16.mxu0 0
    %2823 = vmatpush1.bf16.msra.mxu0 %v2745
    %2824 = vmatprep.subr.bf16.mxu0 0
    %2825 = vmatpush1.bf16.msra.mxu0 %v2746
    %2826 = vmatprep.subr.bf16.mxu0 0
    %2827 = vmatpush1.bf16.msra.mxu0 %v2747
    %2828 = vmatprep.mubr.bf16.mxu0 %v2530
    %2829 = vmatmul.mubr.bf16.gmra.mrb[0].mxu0 %v2529
    %v2830 = vpop.f32.mrb[0].mxu0
    %v2831 = vadd.f32 %v2602, %v2830
    %v2832 = vpop.f32.mrb[0].mxu0
    %v2833 = vpop.f32.mrb[0].mxu0
    %v2834 = vadd.f32 %v2602, %v2833
    %v2835 = vpop.f32.mrb[0].mxu0
    %2836 = vdwg.mxu0
    %2837 = vmatprep.subr.bf16.mxu0 0
    %2838 = vmatpush1.bf16.msra.mxu0 %v2748
    %2839 = vmatprep.subr.bf16.mxu0 0
    %2840 = vmatpush1.bf16.msra.mxu0 %v2749
    %2841 = vmatprep.subr.bf16.mxu0 0
    %2842 = vmatpush1.bf16.msra.mxu0 %v2750
    %2843 = vmatprep.subr.bf16.mxu0 0
    %2844 = vmatpush1.bf16.msra.mxu0 %v2751
    %2845 = vmatprep.subr.bf16.mxu0 0
    %2846 = vmatpush1.bf16.msra.mxu0 %v2752
    %2847 = vmatprep.subr.bf16.mxu0 0
    %2848 = vmatpush1.bf16.msra.mxu0 %v2753
    %2849 = vmatprep.subr.bf16.mxu0 0
    %2850 = vmatpush1.bf16.msra.mxu0 %v2754
    %2851 = vmatprep.subr.bf16.mxu0 0
    %2852 = vmatpush1.bf16.msra.mxu0 %v2755
    %2853 = vmatprep.subr.bf16.mxu0 0
    %2854 = vmatpush1.bf16.msra.mxu0 %v2756
    %2855 = vmatprep.subr.bf16.mxu0 0
    %2856 = vmatpush1.bf16.msra.mxu0 %v2757
    %2857 = vmatprep.subr.bf16.mxu0 0
    %2858 = vmatpush1.bf16.msra.mxu0 %v2758
    %2859 = vmatprep.subr.bf16.mxu0 0
    %2860 = vmatpush1.bf16.msra.mxu0 %v2759
    %2861 = vmatprep.subr.bf16.mxu0 0
    %2862 = vmatpush1.bf16.msra.mxu0 %v2760
    %2863 = vmatprep.subr.bf16.mxu0 0
    %2864 = vmatpush1.bf16.msra.mxu0 %v2761
    %2865 = vmatprep.subr.bf16.mxu0 0
    %2866 = vmatpush1.bf16.msra.mxu0 %v2762
    %2867 = vmatprep.subr.bf16.mxu0 0
    %2868 = vmatpush1.bf16.msra.mxu0 %v2763
    %2869 = vmatprep.mubr.bf16.mxu0 %v2532
    %2870 = vmatmul.mubr.bf16.gmra.mrb[0].mxu0 %v2531
    %v2871 = vpop.f32.mrb[0].mxu0
    %v2872 = vadd.f32 %v2831, %v2871
    %v2873 = vpop.f32.mrb[0].mxu0
    %v2874 = vpop.f32.mrb[0].mxu0
    %v2875 = vadd.f32 %v2834, %v2874
    %v2876 = vpop.f32.mrb[0].mxu0
    %2877 = vdwg.mxu0
    %v2878 = vmax.f32 %v2872, 0.0
    %v2879 = vmax.f32 %v2875, 0.0
    %v2880 = vpack.c.bf16 %v2879, %v2878
    %v2881 = vld [vmem:[%s5] sm:$0xf]
    %v2882 = vld [vmem:[%s5 + $0x4] sm:$0xf]
    %v2883 = vld [vmem:[%s5 + $0x8] sm:$0xf]
    %v2884 = vld [vmem:[%s5 + $0xc] sm:$0xf]
    %v2885 = vld [vmem:[%s5 + $0x10] sm:$0xf]
    %v2886 = vld [vmem:[%s5 + $0x14] sm:$0xf]
    %v2887 = vld [vmem:[%s5 + $0x18] sm:$0xf]
    %v2888 = vld [vmem:[%s5 + $0x1c] sm:$0xf]
    %v2889 = vld [vmem:[%s5 + $0x20] sm:$0xf]
    %v2890 = vld [vmem:[%s5 + $0x24] sm:$0xf]
    %v2891 = vld [vmem:[%s5 + $0x28] sm:$0xf]
    %v2892 = vld [vmem:[%s5 + $0x2c] sm:$0xf]
    %v2893 = vld [vmem:[%s5 + $0x30] sm:$0xf]
    %v2894 = vld [vmem:[%s5 + $0x34] sm:$0xf]
    %v2895 = vld [vmem:[%s5 + $0x38] sm:$0xf]
    %v2896 = vld [vmem:[%s5 + $0x3c] sm:$0xf]
    %v2897 = vld [vmem:[#allocation9] sm:$0x1]
    %v2899 = vlaneseq
    %v2900 = vshrl.u32 %v2899, 7
    %v2901 = vsub.s32 0, %v2900
    %v2902 = vrot.slane %v2897, %v2901
    %v2920 = vunpack.c.l.b16 %v2881
    %v2921 = vunpack.c.l.b16 %v2882
    %v2922 = vunpack.c.l.b16 %v2883
    %v2923 = vunpack.c.l.b16 %v2884
    %v2924 = vunpack.c.l.b16 %v2885
    %v2925 = vunpack.c.l.b16 %v2886
    %v2926 = vunpack.c.l.b16 %v2887
    %v2927 = vunpack.c.l.b16 %v2888
    %v2928 = vunpack.c.l.b16 %v2889
    %v2929 = vunpack.c.l.b16 %v2890
    %v2930 = vunpack.c.l.b16 %v2891
    %v2931 = vunpack.c.l.b16 %v2892
    %v2932 = vunpack.c.l.b16 %v2893
    %v2933 = vunpack.c.l.b16 %v2894
    %v2934 = vunpack.c.l.b16 %v2895
    %v2935 = vunpack.c.l.b16 %v2896
    %v2936 = vpack.c.b16 %v2921, %v2920
    %v2937 = vpack.c.b16 %v2923, %v2922
    %v2938 = vpack.c.b16 %v2925, %v2924
    %v2939 = vpack.c.b16 %v2927, %v2926
    %v2940 = vpack.c.b16 %v2929, %v2928
    %v2941 = vpack.c.b16 %v2931, %v2930
    %v2942 = vpack.c.b16 %v2933, %v2932
    %v2943 = vpack.c.b16 %v2935, %v2934
    %2952 = vmatprep.subr.bf16.mxu0 0
    %2953 = vmatpush1.bf16.msra.mxu0 %v2936
    %2954 = vmatprep.subr.bf16.mxu0 0
    %2955 = vmatpush1.bf16.msra.mxu0 %v2937
    %2956 = vmatprep.subr.bf16.mxu0 0
    %2957 = vmatpush1.bf16.msra.mxu0 %v2938
    %2958 = vmatprep.subr.bf16.mxu0 0
    %2959 = vmatpush1.bf16.msra.mxu0 %v2939
    %2960 = vmatprep.subr.bf16.mxu0 0
    %2961 = vmatpush1.bf16.msra.mxu0 %v2940
    %2962 = vmatprep.subr.bf16.mxu0 0
    %2963 = vmatpush1.bf16.msra.mxu0 %v2941
    %2964 = vmatprep.subr.bf16.mxu0 0
    %2965 = vmatpush1.bf16.msra.mxu0 %v2942
    %2966 = vmatprep.subr.bf16.mxu0 0
    %2967 = vmatpush1.bf16.msra.mxu0 %v2943
    %2968 = vmatprep.subr.bf16.mxu0 0
    %2969 = vmatpush1.bf16.msra.mxu0 0
    %2970 = vmatprep.subr.bf16.mxu0 0
    %2971 = vmatpush1.bf16.msra.mxu0 0
    %2972 = vmatprep.subr.bf16.mxu0 0
    %2973 = vmatpush1.bf16.msra.mxu0 0
    %2974 = vmatprep.subr.bf16.mxu0 0
    %2975 = vmatpush1.bf16.msra.mxu0 0
    %2976 = vmatprep.subr.bf16.mxu0 0
    %2977 = vmatpush1.bf16.msra.mxu0 0
    %2978 = vmatprep.subr.bf16.mxu0 0
    %2979 = vmatpush1.bf16.msra.mxu0 0
    %2980 = vmatprep.subr.bf16.mxu0 0
    %2981 = vmatpush1.bf16.msra.mxu0 0
    %2982 = vmatprep.subr.bf16.mxu0 0
    %2983 = vmatpush1.bf16.msra.mxu0 0
    %2984 = vmatprep.mubr.bf16.mxu0 0
    %2985 = vmatmul.mubr.bf16.gmra.mrb[0].mxu0 %v2880
    %v2986 = vpop.f32.mrb[0].mxu0
    %v2987 = vadd.f32 %v2902, %v2986
    %v2988 = vpop.f32.mrb[0].mxu0
    %v2989 = vpop.f32.mrb[0].mxu0
    %v2990 = vadd.f32 %v2902, %v2989
    %v2991 = vpop.f32.mrb[0].mxu0
    %2992 = vdwg.mxu0
    %vm2993 = vcmask 15360
    %2994 = vst.msk [vmem:[%s7] sm:$0xff] %vm2993, %v2987
    %2995 = vst.msk [vmem:[%s7 + $0x8] sm:$0xff] %vm2993, %v2990
    // Predicated region
    $region50: #{rust_classifier_head.1} parent=1 // pred_check
      _
    $region51: #{rust_classifier_head.1} parent=1 // pred_check_branch
      %2997 = sbr.rel (0) target = $region53
    $region52: #{rust_classifier_head.1} parent=1 // pred_region
      _
    $region53: #{rust_classifier_head.1} parent=1 // pred_fallthru
      _
    // Predicated region
    $region54: #{rust_classifier_head.1} parent=1 // pred_check
      _
    $region55: #{rust_classifier_head.1} parent=1 // pred_check_branch
      %2999 = sbr.rel (0) target = $region57
    $region56: #{rust_classifier_head.1} parent=1 // pred_region
      _
    $region57: #{rust_classifier_head.1} parent=1 // pred_fallthru
      _
    %3000 = vsyncpa [#allocation3], 1
    %3001 = vsyncpa [#allocation5], 1
    %3002 = vsyncpa [#allocation8], 1

</llo_original>
